<compile_context>
chip_gen: v7x
topology: tpu7x:2x2x1
jax: 0.10.0
libtpu: 0.0.40
codegen_flags: <defaults>
</compile_context>

<pallas_src>
import functools

import jax
import jax.numpy as jnp
from jax import lax
from jax.experimental import pallas as pl
from jax.experimental.pallas import tpu as pltpu

EPS = 1e-5
CP = 128          # channel padding -> one full vreg lane width


def _build_tcn_kernel(T, Bt, layer_cfgs, dense_cfg, out_width):
    """Whole TCN (all TemporalBlocks + last-step dense) as one kernel.

    Refs per grid step (Bt samples):
      x_ref : (Bt, T, CP) f32, channels zero-padded to CP
      w_ref : (W_rows, CP) bf16  -- every conv/downsample/dense weight, 128-row aligned
      b_ref : (B_rows, CP) f32   -- every bias, one row each
      o_ref : (1, Bt, out_width) f32
    """
    M = Bt * T

    def kernel(x_ref, w_ref, b_ref, o_ref):
        def wmat(off, rows):
            return w_ref[off:off + rows, :]            # (rows, CP) bf16, aligned slice

        def brow(off):
            return b_ref[off:off + 1, :]               # (1, CP) f32

        def shifted(h, s):
            # Causal time shift within each sample: tap[b, t] = h[b, t - s] (0 if t < s).
            if s >= T:
                return jnp.zeros_like(h)
            return jnp.concatenate(
                [jnp.zeros((Bt, s, CP), h.dtype), h[:, :T - s, :]], axis=1)

        def causal_conv(h, h_bf, w_off, b_off, K, dilation):
            # out[t] = b + sum_k w[k] @ h[t - (K-1-k)*dilation]; ONE MXU dot over the
            # bf16 im2col (taps concatenated lane-wise; every piece is 128-lane aligned).
            taps = []
            for k in range(K):
                s = (K - 1 - k) * dilation
                taps.append(h_bf if s == 0 else shifted(h, s).astype(jnp.bfloat16))
            stacked = taps[0] if K == 1 else jnp.concatenate(taps, axis=-1)
            y = jnp.dot(stacked.reshape(M, K * CP), wmat(w_off, K * CP),
                        preferred_element_type=jnp.float32)       # (M, CP) f32 acc
            return (y + brow(b_off)).reshape(Bt, T, CP)

        def ln_relu(y, cout, cmask):
            # nn.LayerNorm((C_out, L), elementwise_affine=False) per sample, eps=1e-5.
            # Padded channels of y are exactly zero (zero-padded weights/biases and the
            # output mask below), so the plain sum equals the sum over real channels;
            # cmask keeps them out of the variance and re-zeroes the output.
            inv_n = 1.0 / float(T * cout)
            mean = jnp.sum(y, axis=(1, 2), keepdims=True) * inv_n       # (Bt, 1, 1)
            diff = (y - mean) * cmask
            var = jnp.sum(diff * diff, axis=(1, 2), keepdims=True) * inv_n
            return jnp.maximum(diff * lax.rsqrt(var + EPS), 0.0)

        h = x_ref[...]                                  # (Bt, T, CP) f32
        for cfg in layer_cfgs:                          # static unroll over layers
            K, d, cout = cfg['K'], cfg['dilation'], cfg['cout']
            # channel mask hoisted: built once per layer, reused by both LayerNorms
            cmask = (lax.broadcasted_iota(jnp.int32, (1, 1, CP), 2) < cout
                     ).astype(jnp.float32)
            h_bf = h.astype(jnp.bfloat16)               # single bf16 cast of h per layer
            if cfg['has_ds']:
                res = (jnp.dot(h_bf.reshape(M, CP), wmat(cfg['wd'], CP),
                               preferred_element_type=jnp.float32)
                       + brow(cfg['bd'])).reshape(Bt, T, CP)
            else:
                res = h                                 # identity residual (f32)

            h1 = ln_relu(causal_conv(h, h_bf, cfg['w1'], cfg['b1'], K, d), cout, cmask)
            h1_bf = h1.astype(jnp.bfloat16)
            h2 = ln_relu(causal_conv(h1, h1_bf, cfg['w2'], cfg['b2'], K, d), cout, cmask)
            h = jnp.maximum(h2 + res, 0.0)              # (Bt, T, CP) f32

        # Dense head on the last time step (== linear(out[:, :, -1]) in PyTorch NCL):
        # one dot for the whole Bt block, lane-dense 128-wide store.
        h_last = h[:, T - 1:T, :].reshape(Bt, CP)
        y = jnp.dot(h_last.astype(jnp.bfloat16), wmat(dense_cfg['w'], CP),
                    preferred_element_type=jnp.float32) + brow(dense_cfg['b'])
        o_ref[...] = y.reshape(1, Bt, out_width)

    return kernel


def _pad_axis(a, axis, new_size):
    pad = [(0, 0)] * a.ndim
    pad[axis] = (0, new_size - a.shape[axis])
    return jnp.pad(a, pad)


def _choose_block_batch(N, T):
    # Enough samples per grid step to fill the MXU M dimension (Bt*T >= 256) and amortize
    # the ~0.35 us per-step overhead, but keep >= 2 grid steps when N >= 2 so the
    # ("parallel",) semantics can shard the batch across v7x's two TensorCores.
    # Per-step VMEM (x block double-buffered + bf16 im2col) stays in the hundreds of KiB
    # at these sizes -- far under even v7x's 64 MiB -- so no extra cap is needed.
    bt = max(1, pl.cdiv(256, T))
    if N >= 2:
        bt = min(bt, max(1, N // 2))
    return max(1, min(bt, N))


def tcn_forward(x_ncl, params, dense, kernel_size):
    """x_ncl: (N, C, L) like the PyTorch module. Returns (N, num_outputs)."""
    N, _, T = x_ncl.shape
    num_outputs = dense['w'].shape[1]

    Bt = _choose_block_batch(N, T)
    G = pl.cdiv(N, Bt)
    N_pad = G * Bt

    # NLC layout, channels (lane axis) zero-padded to CP, batch padded to G*Bt.
    x = jnp.transpose(x_ncl, (0, 2, 1)).astype(jnp.float32)
    x = _pad_axis(x, 2, CP)
    if N_pad != N:
        x = _pad_axis(x, 0, N_pad)

    # ---- Pack every weight into one bf16 slab (rows 128-aligned) and every bias into
    # ---- one f32 slab (one row each): two resident inputs instead of one per tensor.
    w_parts, b_parts = [], []
    w_off, b_off = [0], [0]

    def add_w(mat):                    # mat: (rows, CP) f32, rows % 128 == 0
        off = w_off[0]
        w_parts.append(mat)
        w_off[0] += mat.shape[0]
        return off

    def add_b(vec):                    # vec: (c,)
        off = b_off[0]
        b_parts.append(_pad_axis(vec.reshape(1, -1), 1, CP).astype(jnp.float32))
        b_off[0] += 1
        return off

    def conv_w(w, K):                  # (K, ci, co) -> (K*CP, CP)  (im2col row layout)
        return _pad_axis(_pad_axis(w, 1, CP), 2, CP).reshape(K * CP, CP)

    def mat_w(w):                      # (ci, co) -> (CP, CP)
        return _pad_axis(_pad_axis(w, 0, CP), 1, CP)

    layer_cfgs = []
    for i, layer in enumerate(params):
        K = kernel_size
        dilation = 2 ** i
        cout = layer['w1'].shape[2]
        has_ds = 'wd' in layer
        cfg = dict(K=K, dilation=dilation, cout=cout, has_ds=has_ds)
        cfg['w1'] = add_w(conv_w(layer['w1'], K))
        cfg['b1'] = add_b(layer['b1'])
        cfg['w2'] = add_w(conv_w(layer['w2'], K))
        cfg['b2'] = add_b(layer['b2'])
        if has_ds:
            cfg['wd'] = add_w(mat_w(layer['wd']))
            cfg['bd'] = add_b(layer['bd'])
        layer_cfgs.append(cfg)

    dense_cfg = dict(w=add_w(mat_w(dense['w'])), b=add_b(dense['b']))

    w_slab = jnp.concatenate(w_parts, axis=0).astype(jnp.bfloat16)   # (W_rows, CP)
    b_slab = jnp.concatenate(b_parts, axis=0)                        # (B_rows, CP) f32

    kernel = _build_tcn_kernel(T, Bt, layer_cfgs, dense_cfg, CP)

    out = pl.pallas_call(
        kernel,
        out_shape=jax.ShapeDtypeStruct((G, Bt, CP), jnp.float32),
        grid_spec=pltpu.PrefetchScalarGridSpec(
            num_scalar_prefetch=0,
            grid=(G,),                                          # Bt samples per step
            in_specs=[
                pl.BlockSpec((Bt, T, CP), lambda g: (g, 0, 0)),
                pl.BlockSpec(w_slab.shape, lambda g: (0, 0)),   # resident weight slab
                pl.BlockSpec(b_slab.shape, lambda g: (0, 0)),   # resident bias slab
            ],
            out_specs=pl.BlockSpec((1, Bt, CP), lambda g: (g, 0, 0)),
        ),
        compiler_params=pltpu.CompilerParams(
            dimension_semantics=("parallel",)),                 # megacore-shard the batch
    )(x, w_slab, b_slab)

    return out.reshape(N_pad, CP)[:N, :num_outputs]


def init_tcn_params(key, num_inputs, num_channels, num_outputs, kernel_size):
    """Deterministic synthetic parameters matching the PyTorch module's shapes.
    Conv weights stored as (K, Cin, Cout); 1x1 downsample as (Cin, Cout); dense as
    (C_last, num_outputs).  weight_norm collapses to the raw weight at init."""
    params = []
    cin = num_inputs
    for cout in num_channels:
        key, k1, k2, k3, k4, k5, k6 = jax.random.split(key, 7)
        layer = {
            'w1': 0.01 * jax.random.normal(k1, (kernel_size, cin, cout), jnp.float32),
            'b1': 0.05 * jax.random.normal(k2, (cout,), jnp.float32),
            'w2': 0.01 * jax.random.normal(k3, (kernel_size, cout, cout), jnp.float32),
            'b2': 0.05 * jax.random.normal(k4, (cout,), jnp.float32),
        }
        if cin != cout:
            layer['wd'] = 0.01 * jax.random.normal(k5, (cin, cout), jnp.float32)
            layer['bd'] = 0.05 * jax.random.normal(k6, (cout,), jnp.float32)
        params.append(layer)
        cin = cout
    key, k7, k8 = jax.random.split(key, 3)
    dense = {
        'w': 0.01 * jax.random.normal(k7, (num_channels[-1], num_outputs), jnp.float32),
        'b': 0.05 * jax.random.normal(k8, (num_outputs,), jnp.float32),
    }
    return params, dense


def tcn_reference(x_ncl, params, dense, kernel_size):
    """Pure-JAX f32 reference with the exact PyTorch forward semantics."""
    h = x_ncl.astype(jnp.float32)                       # (N, C, L)
    N, _, L = h.shape
    for i, layer in enumerate(params):
        d = 2 ** i
        K = kernel_size

        def conv(hh, w, b):                             # w: (K, ci, co)
            y = b[None, :, None]
            for k in range(K):
                s = (K - 1 - k) * d
                sh = jnp.pad(hh, ((0, 0), (0, 0), (s, 0)))[:, :, :L]
                y = y + jnp.einsum('ncl,co->nol', sh, w[k])
            return y

        def ln_relu(y):
            mean = jnp.mean(y, axis=(1, 2), keepdims=True)
            var = jnp.mean((y - mean) ** 2, axis=(1, 2), keepdims=True)
            return jnp.maximum((y - mean) * lax.rsqrt(var + EPS), 0.0)

        h1 = ln_relu(conv(h, layer['w1'], layer['b1']))
        h2 = ln_relu(conv(h1, layer['w2'], layer['b2']))
        if 'wd' in layer:
            res = jnp.einsum('ncl,co->nol', h, layer['wd']) + layer['bd'][None, :, None]
        else:
            res = h
        h = jnp.maximum(h2 + res, 0.0)
    return h[:, :, -1] @ dense['w'] + dense['b']


if __name__ == "__main__":
    # The PyTorch module's LayerNorm(normalized_shape=(n_outputs, batch)) requires the
    # sequence length L to equal the `batch` constructor argument.
    num_inputs = 4
    num_channels = [8, 16]        # two TemporalBlocks
    num_outputs = 5
    batch = 16                    # == sequence length L
    N = 2                         # actual batch size of the input
    kernel_size = 2

    key = jax.random.PRNGKey(0)
    key, xk = jax.random.split(key)
    x = jax.random.normal(xk, (N, num_inputs, batch), jnp.float32)   # NCL

    params, dense = init_tcn_params(key, num_inputs, num_channels,
                                    num_outputs, kernel_size)

    forward = jax.jit(functools.partial(tcn_forward, kernel_size=kernel_size))
    out = jax.block_until_ready(forward(x, params, dense))
    assert out.shape == (N, num_outputs), out.shape

    # Correctness check vs the pure-JAX f32 reference (bf16 MXU operands -> loose tol).
    ref = jax.block_until_ready(tcn_reference(x, params, dense, kernel_size))
    max_err = float(jnp.max(jnp.abs(out - ref)))
    assert max_err < 2e-2, f"max abs err {max_err}"
    print("KERNEL_OK")
</pallas_src>

<mosaic_0001>
module attributes {stable_mosaic.version = 11 : i64} {
  func.func @kernel(%arg0: i32, %arg1: memref<1x16x128xf32, #tpu.memory_space<vmem>>, %arg2: memref<1408x128xbf16, #tpu.memory_space<vmem>>, %arg3: memref<7x128xf32, #tpu.memory_space<vmem>>, %arg4: memref<1x1x128xf32, #tpu.memory_space<vmem>>) attributes {dimension_semantics = [#tpu.dimension_semantics<parallel>], iteration_bounds = array<i64: 2>, scalar_prefetch = 0 : i64, scratch_operands = 0 : i64, tpu.core_type = #tpu.core_type<tc>, window_params = [{transform_indices = @transform_0, window_bounds = array<i64: 1, 16, 128>}, {pipeline_mode = #tpu.pipeline_mode<synchronous>, transform_indices = @transform_1, window_bounds = array<i64: 1408, 128>}, {pipeline_mode = #tpu.pipeline_mode<synchronous>, transform_indices = @transform_2, window_bounds = array<i64: 7, 128>}, {transform_indices = @transform_3, window_bounds = array<i64: 1, 1, 128>}]} {
    %c0 = arith.constant 0 : index
    %c0_0 = arith.constant 0 : index
    %c0_1 = arith.constant 0 : index
    %0 = vector.load %arg1[%c0, %c0_0, %c0_1] : memref<1x16x128xf32, #tpu.memory_space<vmem>>, vector<1x16x128xf32>
    %1 = tpu.iota {dimensions = array<i32: 2>} : vector<1x1x128xi32>
    %c8_i32 = arith.constant 8 : i32
    %2 = vector.broadcast %c8_i32 : i32 to vector<1x1x128xi32>
    %3 = arith.cmpi slt, %1, %2 : vector<1x1x128xi32>
    %4 = arith.extui %3 : vector<1x1x128xi1> to vector<1x1x128xi32>
    %5 = arith.sitofp %4 : vector<1x1x128xi32> to vector<1x1x128xf32>
    %6 = arith.truncf %0 : vector<1x16x128xf32> to vector<1x16x128xbf16>
    %7 = vector.shape_cast %6 : vector<1x16x128xbf16> to vector<16x128xbf16>
    %c512 = arith.constant 512 : index
    %c0_2 = arith.constant 0 : index
    %8 = vector.load %arg2[%c512, %c0_2] : memref<1408x128xbf16, #tpu.memory_space<vmem>>, vector<128x128xbf16>
    %cst = arith.constant dense<0.000000e+00> : vector<16x128xf32>
    %9 = tpu.matmul %7, %8, %cst {dimension_numbers = #tpu.dot_dimension_numbers<[1], [0], [0], [1], [0, 0, 1, 1], [], []>} : vector<16x128xbf16>, vector<128x128xbf16>, vector<16x128xf32> -> vector<16x128xf32>
    %c2 = arith.constant 2 : index
    %c0_3 = arith.constant 0 : index
    %10 = vector.load %arg3[%c2, %c0_3] : memref<7x128xf32, #tpu.memory_space<vmem>>, vector<1x128xf32>
    %11 = vector.broadcast %10 : vector<1x128xf32> to vector<16x128xf32>
    %12 = arith.addf %9, %11 : vector<16x128xf32>
    %13 = vector.shape_cast %12 : vector<16x128xf32> to vector<1x16x128xf32>
    %cst_4 = arith.constant 0.000000e+00 : f32
    %14 = vector.broadcast %cst_4 : f32 to vector<1x1x128xf32>
    %15 = vector.extract_strided_slice %0 {offsets = [0, 0, 0], sizes = [1, 15, 128], strides = [1, 1, 1]} : vector<1x16x128xf32> to vector<1x15x128xf32>
    %16 = tpu.concatenate %14, %15 in 1 : vector<1x1x128xf32>, vector<1x15x128xf32> -> vector<1x16x128xf32>
    %17 = arith.truncf %16 : vector<1x16x128xf32> to vector<1x16x128xbf16>
    %18 = tpu.concatenate %17, %6 in 2 : vector<1x16x128xbf16>, vector<1x16x128xbf16> -> vector<1x16x256xbf16>
    %19 = vector.shape_cast %18 : vector<1x16x256xbf16> to vector<16x256xbf16>
    %c0_5 = arith.constant 0 : index
    %c0_6 = arith.constant 0 : index
    %20 = vector.load %arg2[%c0_5, %c0_6] : memref<1408x128xbf16, #tpu.memory_space<vmem>>, vector<256x128xbf16>
    %cst_7 = arith.constant dense<0.000000e+00> : vector<16x128xf32>
    %21 = tpu.matmul %19, %20, %cst_7 {dimension_numbers = #tpu.dot_dimension_numbers<[1], [0], [0], [1], [0, 0, 1, 1], [], []>} : vector<16x256xbf16>, vector<256x128xbf16>, vector<16x128xf32> -> vector<16x128xf32>
    %c0_8 = arith.constant 0 : index
    %c0_9 = arith.constant 0 : index
    %22 = vector.load %arg3[%c0_8, %c0_9] : memref<7x128xf32, #tpu.memory_space<vmem>>, vector<1x128xf32>
    %23 = vector.broadcast %22 : vector<1x128xf32> to vector<16x128xf32>
    %24 = arith.addf %21, %23 : vector<16x128xf32>
    %25 = vector.shape_cast %24 : vector<16x128xf32> to vector<1x16x128xf32>
    %cst_10 = arith.constant dense<0.000000e+00> : vector<1xf32>
    %26 = vector.multi_reduction <add>, %25, %cst_10 [1, 2] : vector<1x16x128xf32> to vector<1xf32>
    %27 = vector.shape_cast %26 : vector<1xf32> to vector<1x1x1xf32>
    %cst_11 = arith.constant 7.812500e-03 : f32
    %28 = vector.broadcast %cst_11 : f32 to vector<1x1x1xf32>
    %29 = arith.mulf %27, %28 : vector<1x1x1xf32>
    %30 = vector.broadcast %29 : vector<1x1x1xf32> to vector<1x16x128xf32>
    %31 = arith.subf %25, %30 : vector<1x16x128xf32>
    %32 = vector.broadcast %5 : vector<1x1x128xf32> to vector<1x16x128xf32>
    %33 = arith.mulf %31, %32 : vector<1x16x128xf32>
    %34 = arith.mulf %33, %33 : vector<1x16x128xf32>
    %cst_12 = arith.constant dense<0.000000e+00> : vector<1xf32>
    %35 = vector.multi_reduction <add>, %34, %cst_12 [1, 2] : vector<1x16x128xf32> to vector<1xf32>
    %36 = vector.shape_cast %35 : vector<1xf32> to vector<1x1x1xf32>
    %cst_13 = arith.constant 7.812500e-03 : f32
    %37 = vector.broadcast %cst_13 : f32 to vector<1x1x1xf32>
    %38 = arith.mulf %36, %37 : vector<1x1x1xf32>
    %cst_14 = arith.constant 9.99999974E-6 : f32
    %39 = vector.broadcast %cst_14 : f32 to vector<1x1x1xf32>
    %40 = arith.addf %38, %39 : vector<1x1x1xf32>
    %41 = math.rsqrt %40 : vector<1x1x1xf32>
    %42 = vector.broadcast %41 : vector<1x1x1xf32> to vector<1x16x128xf32>
    %43 = arith.mulf %33, %42 : vector<1x16x128xf32>
    %cst_15 = arith.constant 0.000000e+00 : f32
    %44 = vector.broadcast %cst_15 : f32 to vector<1x16x128xf32>
    %45 = arith.maximumf %43, %44 : vector<1x16x128xf32>
    %46 = arith.truncf %45 : vector<1x16x128xf32> to vector<1x16x128xbf16>
    %cst_16 = arith.constant 0.000000e+00 : f32
    %47 = vector.broadcast %cst_16 : f32 to vector<1x1x128xf32>
    %48 = vector.extract_strided_slice %45 {offsets = [0, 0, 0], sizes = [1, 15, 128], strides = [1, 1, 1]} : vector<1x16x128xf32> to vector<1x15x128xf32>
    %49 = tpu.concatenate %47, %48 in 1 : vector<1x1x128xf32>, vector<1x15x128xf32> -> vector<1x16x128xf32>
    %50 = arith.truncf %49 : vector<1x16x128xf32> to vector<1x16x128xbf16>
    %51 = tpu.concatenate %50, %46 in 2 : vector<1x16x128xbf16>, vector<1x16x128xbf16> -> vector<1x16x256xbf16>
    %52 = vector.shape_cast %51 : vector<1x16x256xbf16> to vector<16x256xbf16>
    %c256 = arith.constant 256 : index
    %c0_17 = arith.constant 0 : index
    %53 = vector.load %arg2[%c256, %c0_17] : memref<1408x128xbf16, #tpu.memory_space<vmem>>, vector<256x128xbf16>
    %cst_18 = arith.constant dense<0.000000e+00> : vector<16x128xf32>
    %54 = tpu.matmul %52, %53, %cst_18 {dimension_numbers = #tpu.dot_dimension_numbers<[1], [0], [0], [1], [0, 0, 1, 1], [], []>} : vector<16x256xbf16>, vector<256x128xbf16>, vector<16x128xf32> -> vector<16x128xf32>
    %c1 = arith.constant 1 : index
    %c0_19 = arith.constant 0 : index
    %55 = vector.load %arg3[%c1, %c0_19] : memref<7x128xf32, #tpu.memory_space<vmem>>, vector<1x128xf32>
    %56 = vector.broadcast %55 : vector<1x128xf32> to vector<16x128xf32>
    %57 = arith.addf %54, %56 : vector<16x128xf32>
    %58 = vector.shape_cast %57 : vector<16x128xf32> to vector<1x16x128xf32>
    %cst_20 = arith.constant dense<0.000000e+00> : vector<1xf32>
    %59 = vector.multi_reduction <add>, %58, %cst_20 [1, 2] : vector<1x16x128xf32> to vector<1xf32>
    %60 = vector.shape_cast %59 : vector<1xf32> to vector<1x1x1xf32>
    %cst_21 = arith.constant 7.812500e-03 : f32
    %61 = vector.broadcast %cst_21 : f32 to vector<1x1x1xf32>
    %62 = arith.mulf %60, %61 : vector<1x1x1xf32>
    %63 = vector.broadcast %62 : vector<1x1x1xf32> to vector<1x16x128xf32>
    %64 = arith.subf %58, %63 : vector<1x16x128xf32>
    %65 = vector.broadcast %5 : vector<1x1x128xf32> to vector<1x16x128xf32>
    %66 = arith.mulf %64, %65 : vector<1x16x128xf32>
    %67 = arith.mulf %66, %66 : vector<1x16x128xf32>
    %cst_22 = arith.constant dense<0.000000e+00> : vector<1xf32>
    %68 = vector.multi_reduction <add>, %67, %cst_22 [1, 2] : vector<1x16x128xf32> to vector<1xf32>
    %69 = vector.shape_cast %68 : vector<1xf32> to vector<1x1x1xf32>
    %cst_23 = arith.constant 7.812500e-03 : f32
    %70 = vector.broadcast %cst_23 : f32 to vector<1x1x1xf32>
    %71 = arith.mulf %69, %70 : vector<1x1x1xf32>
    %cst_24 = arith.constant 9.99999974E-6 : f32
    %72 = vector.broadcast %cst_24 : f32 to vector<1x1x1xf32>
    %73 = arith.addf %71, %72 : vector<1x1x1xf32>
    %74 = math.rsqrt %73 : vector<1x1x1xf32>
    %75 = vector.broadcast %74 : vector<1x1x1xf32> to vector<1x16x128xf32>
    %76 = arith.mulf %66, %75 : vector<1x16x128xf32>
    %cst_25 = arith.constant 0.000000e+00 : f32
    %77 = vector.broadcast %cst_25 : f32 to vector<1x16x128xf32>
    %78 = arith.maximumf %76, %77 : vector<1x16x128xf32>
    %79 = arith.addf %78, %13 : vector<1x16x128xf32>
    %cst_26 = arith.constant 0.000000e+00 : f32
    %80 = vector.broadcast %cst_26 : f32 to vector<1x16x128xf32>
    %81 = arith.maximumf %79, %80 : vector<1x16x128xf32>
    %82 = tpu.iota {dimensions = array<i32: 2>} : vector<1x1x128xi32>
    %c16_i32 = arith.constant 16 : i32
    %83 = vector.broadcast %c16_i32 : i32 to vector<1x1x128xi32>
    %84 = arith.cmpi slt, %82, %83 : vector<1x1x128xi32>
    %85 = arith.extui %84 : vector<1x1x128xi1> to vector<1x1x128xi32>
    %86 = arith.sitofp %85 : vector<1x1x128xi32> to vector<1x1x128xf32>
    %87 = arith.truncf %81 : vector<1x16x128xf32> to vector<1x16x128xbf16>
    %88 = vector.shape_cast %87 : vector<1x16x128xbf16> to vector<16x128xbf16>
    %c1152 = arith.constant 1152 : index
    %c0_27 = arith.constant 0 : index
    %89 = vector.load %arg2[%c1152, %c0_27] : memref<1408x128xbf16, #tpu.memory_space<vmem>>, vector<128x128xbf16>
    %cst_28 = arith.constant dense<0.000000e+00> : vector<16x128xf32>
    %90 = tpu.matmul %88, %89, %cst_28 {dimension_numbers = #tpu.dot_dimension_numbers<[1], [0], [0], [1], [0, 0, 1, 1], [], []>} : vector<16x128xbf16>, vector<128x128xbf16>, vector<16x128xf32> -> vector<16x128xf32>
    %c5 = arith.constant 5 : index
    %c0_29 = arith.constant 0 : index
    %91 = vector.load %arg3[%c5, %c0_29] : memref<7x128xf32, #tpu.memory_space<vmem>>, vector<1x128xf32>
    %92 = vector.broadcast %91 : vector<1x128xf32> to vector<16x128xf32>
    %93 = arith.addf %90, %92 : vector<16x128xf32>
    %94 = vector.shape_cast %93 : vector<16x128xf32> to vector<1x16x128xf32>
    %cst_30 = arith.constant 0.000000e+00 : f32
    %95 = vector.broadcast %cst_30 : f32 to vector<1x2x128xf32>
    %96 = vector.extract_strided_slice %81 {offsets = [0, 0, 0], sizes = [1, 14, 128], strides = [1, 1, 1]} : vector<1x16x128xf32> to vector<1x14x128xf32>
    %97 = tpu.concatenate %95, %96 in 1 : vector<1x2x128xf32>, vector<1x14x128xf32> -> vector<1x16x128xf32>
    %98 = arith.truncf %97 : vector<1x16x128xf32> to vector<1x16x128xbf16>
    %99 = tpu.concatenate %98, %87 in 2 : vector<1x16x128xbf16>, vector<1x16x128xbf16> -> vector<1x16x256xbf16>
    %100 = vector.shape_cast %99 : vector<1x16x256xbf16> to vector<16x256xbf16>
    %c640 = arith.constant 640 : index
    %c0_31 = arith.constant 0 : index
    %101 = vector.load %arg2[%c640, %c0_31] : memref<1408x128xbf16, #tpu.memory_space<vmem>>, vector<256x128xbf16>
    %cst_32 = arith.constant dense<0.000000e+00> : vector<16x128xf32>
    %102 = tpu.matmul %100, %101, %cst_32 {dimension_numbers = #tpu.dot_dimension_numbers<[1], [0], [0], [1], [0, 0, 1, 1], [], []>} : vector<16x256xbf16>, vector<256x128xbf16>, vector<16x128xf32> -> vector<16x128xf32>
    %c3 = arith.constant 3 : index
    %c0_33 = arith.constant 0 : index
    %103 = vector.load %arg3[%c3, %c0_33] : memref<7x128xf32, #tpu.memory_space<vmem>>, vector<1x128xf32>
    %104 = vector.broadcast %103 : vector<1x128xf32> to vector<16x128xf32>
    %105 = arith.addf %102, %104 : vector<16x128xf32>
    %106 = vector.shape_cast %105 : vector<16x128xf32> to vector<1x16x128xf32>
    %cst_34 = arith.constant dense<0.000000e+00> : vector<1xf32>
    %107 = vector.multi_reduction <add>, %106, %cst_34 [1, 2] : vector<1x16x128xf32> to vector<1xf32>
    %108 = vector.shape_cast %107 : vector<1xf32> to vector<1x1x1xf32>
    %cst_35 = arith.constant 3.906250e-03 : f32
    %109 = vector.broadcast %cst_35 : f32 to vector<1x1x1xf32>
    %110 = arith.mulf %108, %109 : vector<1x1x1xf32>
    %111 = vector.broadcast %110 : vector<1x1x1xf32> to vector<1x16x128xf32>
    %112 = arith.subf %106, %111 : vector<1x16x128xf32>
    %113 = vector.broadcast %86 : vector<1x1x128xf32> to vector<1x16x128xf32>
    %114 = arith.mulf %112, %113 : vector<1x16x128xf32>
    %115 = arith.mulf %114, %114 : vector<1x16x128xf32>
    %cst_36 = arith.constant dense<0.000000e+00> : vector<1xf32>
    %116 = vector.multi_reduction <add>, %115, %cst_36 [1, 2] : vector<1x16x128xf32> to vector<1xf32>
    %117 = vector.shape_cast %116 : vector<1xf32> to vector<1x1x1xf32>
    %cst_37 = arith.constant 3.906250e-03 : f32
    %118 = vector.broadcast %cst_37 : f32 to vector<1x1x1xf32>
    %119 = arith.mulf %117, %118 : vector<1x1x1xf32>
    %cst_38 = arith.constant 9.99999974E-6 : f32
    %120 = vector.broadcast %cst_38 : f32 to vector<1x1x1xf32>
    %121 = arith.addf %119, %120 : vector<1x1x1xf32>
    %122 = math.rsqrt %121 : vector<1x1x1xf32>
    %123 = vector.broadcast %122 : vector<1x1x1xf32> to vector<1x16x128xf32>
    %124 = arith.mulf %114, %123 : vector<1x16x128xf32>
    %cst_39 = arith.constant 0.000000e+00 : f32
    %125 = vector.broadcast %cst_39 : f32 to vector<1x16x128xf32>
    %126 = arith.maximumf %124, %125 : vector<1x16x128xf32>
    %127 = arith.truncf %126 : vector<1x16x128xf32> to vector<1x16x128xbf16>
    %cst_40 = arith.constant 0.000000e+00 : f32
    %128 = vector.broadcast %cst_40 : f32 to vector<1x2x128xf32>
    %129 = vector.extract_strided_slice %126 {offsets = [0, 0, 0], sizes = [1, 14, 128], strides = [1, 1, 1]} : vector<1x16x128xf32> to vector<1x14x128xf32>
    %130 = tpu.concatenate %128, %129 in 1 : vector<1x2x128xf32>, vector<1x14x128xf32> -> vector<1x16x128xf32>
    %131 = arith.truncf %130 : vector<1x16x128xf32> to vector<1x16x128xbf16>
    %132 = tpu.concatenate %131, %127 in 2 : vector<1x16x128xbf16>, vector<1x16x128xbf16> -> vector<1x16x256xbf16>
    %133 = vector.shape_cast %132 : vector<1x16x256xbf16> to vector<16x256xbf16>
    %c896 = arith.constant 896 : index
    %c0_41 = arith.constant 0 : index
    %134 = vector.load %arg2[%c896, %c0_41] : memref<1408x128xbf16, #tpu.memory_space<vmem>>, vector<256x128xbf16>
    %cst_42 = arith.constant dense<0.000000e+00> : vector<16x128xf32>
    %135 = tpu.matmul %133, %134, %cst_42 {dimension_numbers = #tpu.dot_dimension_numbers<[1], [0], [0], [1], [0, 0, 1, 1], [], []>} : vector<16x256xbf16>, vector<256x128xbf16>, vector<16x128xf32> -> vector<16x128xf32>
    %c4 = arith.constant 4 : index
    %c0_43 = arith.constant 0 : index
    %136 = vector.load %arg3[%c4, %c0_43] : memref<7x128xf32, #tpu.memory_space<vmem>>, vector<1x128xf32>
    %137 = vector.broadcast %136 : vector<1x128xf32> to vector<16x128xf32>
    %138 = arith.addf %135, %137 : vector<16x128xf32>
    %139 = vector.shape_cast %138 : vector<16x128xf32> to vector<1x16x128xf32>
    %cst_44 = arith.constant dense<0.000000e+00> : vector<1xf32>
    %140 = vector.multi_reduction <add>, %139, %cst_44 [1, 2] : vector<1x16x128xf32> to vector<1xf32>
    %141 = vector.shape_cast %140 : vector<1xf32> to vector<1x1x1xf32>
    %cst_45 = arith.constant 3.906250e-03 : f32
    %142 = vector.broadcast %cst_45 : f32 to vector<1x1x1xf32>
    %143 = arith.mulf %141, %142 : vector<1x1x1xf32>
    %144 = vector.broadcast %143 : vector<1x1x1xf32> to vector<1x16x128xf32>
    %145 = arith.subf %139, %144 : vector<1x16x128xf32>
    %146 = vector.broadcast %86 : vector<1x1x128xf32> to vector<1x16x128xf32>
    %147 = arith.mulf %145, %146 : vector<1x16x128xf32>
    %148 = arith.mulf %147, %147 : vector<1x16x128xf32>
    %cst_46 = arith.constant dense<0.000000e+00> : vector<1xf32>
    %149 = vector.multi_reduction <add>, %148, %cst_46 [1, 2] : vector<1x16x128xf32> to vector<1xf32>
    %150 = vector.shape_cast %149 : vector<1xf32> to vector<1x1x1xf32>
    %cst_47 = arith.constant 3.906250e-03 : f32
    %151 = vector.broadcast %cst_47 : f32 to vector<1x1x1xf32>
    %152 = arith.mulf %150, %151 : vector<1x1x1xf32>
    %cst_48 = arith.constant 9.99999974E-6 : f32
    %153 = vector.broadcast %cst_48 : f32 to vector<1x1x1xf32>
    %154 = arith.addf %152, %153 : vector<1x1x1xf32>
    %155 = math.rsqrt %154 : vector<1x1x1xf32>
    %156 = vector.broadcast %155 : vector<1x1x1xf32> to vector<1x16x128xf32>
    %157 = arith.mulf %147, %156 : vector<1x16x128xf32>
    %cst_49 = arith.constant 0.000000e+00 : f32
    %158 = vector.broadcast %cst_49 : f32 to vector<1x16x128xf32>
    %159 = arith.maximumf %157, %158 : vector<1x16x128xf32>
    %160 = arith.addf %159, %94 : vector<1x16x128xf32>
    %cst_50 = arith.constant 0.000000e+00 : f32
    %161 = vector.broadcast %cst_50 : f32 to vector<1x16x128xf32>
    %162 = arith.maximumf %160, %161 : vector<1x16x128xf32>
    %163 = vector.extract_strided_slice %162 {offsets = [0, 15, 0], sizes = [1, 1, 128], strides = [1, 1, 1]} : vector<1x16x128xf32> to vector<1x1x128xf32>
    %164 = vector.shape_cast %163 : vector<1x1x128xf32> to vector<1x128xf32>
    %165 = arith.truncf %164 : vector<1x128xf32> to vector<1x128xbf16>
    %c1280 = arith.constant 1280 : index
    %c0_51 = arith.constant 0 : index
    %166 = vector.load %arg2[%c1280, %c0_51] : memref<1408x128xbf16, #tpu.memory_space<vmem>>, vector<128x128xbf16>
    %cst_52 = arith.constant dense<0.000000e+00> : vector<1x128xf32>
    %167 = tpu.matmul %165, %166, %cst_52 {dimension_numbers = #tpu.dot_dimension_numbers<[1], [0], [0], [1], [0, 0, 1, 1], [], []>} : vector<1x128xbf16>, vector<128x128xbf16>, vector<1x128xf32> -> vector<1x128xf32>
    %c6 = arith.constant 6 : index
    %c0_53 = arith.constant 0 : index
    %168 = vector.load %arg3[%c6, %c0_53] : memref<7x128xf32, #tpu.memory_space<vmem>>, vector<1x128xf32>
    %169 = arith.addf %167, %168 : vector<1x128xf32>
    %170 = vector.shape_cast %169 : vector<1x128xf32> to vector<1x1x128xf32>
    %c0_54 = arith.constant 0 : index
    %c0_55 = arith.constant 0 : index
    %c0_56 = arith.constant 0 : index
    %171 = vector.load %arg4[%c0_54, %c0_55, %c0_56] : memref<1x1x128xf32, #tpu.memory_space<vmem>>, vector<1x1x128xf32>
    tpu.vector_store %arg4[%c0_54, %c0_55, %c0_56], %170 {strides = array<i32>} : memref<1x1x128xf32, #tpu.memory_space<vmem>>, vector<1x1x128xf32>,
    return
  }
  func.func @transform_0(%arg0: i32) -> (i32, i32, i32) {
    %c0_i32 = arith.constant 0 : i32
    %c0_i32_0 = arith.constant 0 : i32
    %c0_i32_1 = arith.constant 0 : i32
    return %arg0, %c0_i32, %c0_i32_0 : i32, i32, i32
  }
  func.func @transform_1(%arg0: i32) -> (i32, i32) {
    %c0_i32 = arith.constant 0 : i32
    %c0_i32_0 = arith.constant 0 : i32
    %c0_i32_1 = arith.constant 0 : i32
    return %c0_i32, %c0_i32_0 : i32, i32
  }
  func.func @transform_2(%arg0: i32) -> (i32, i32) {
    %c0_i32 = arith.constant 0 : i32
    %c0_i32_0 = arith.constant 0 : i32
    %c0_i32_1 = arith.constant 0 : i32
    return %c0_i32, %c0_i32_0 : i32, i32
  }
  func.func @transform_3(%arg0: i32) -> (i32, i32, i32) {
    %c0_i32 = arith.constant 0 : i32
    %c0_i32_0 = arith.constant 0 : i32
    %c0_i32_1 = arith.constant 0 : i32
    return %arg0, %c0_i32, %c0_i32_0 : i32, i32, i32
  }
}

</mosaic_0001>

<llo_original>
// kernel: tcn_forward.1
$region0: #{tcn_forward.1}
  #allocation0 [shape = 'u32[]', space=smem, size = 0x4, offset = 0x4, fixed_abs, tag = 'smem constant byte address 0x4 - core index']
  #allocation1 [shape = 'u32[144,128]{1,0:T(1,128)}', space=vmem, size = 0x12000, scoped, tag = 'internal scratch']
  %s0 = inlined_call_operand.vmem [shape: f32[2,16,128], index: 0, kind: input, shape index: {}]
  %s1 = inlined_call_operand.vmem [shape: bf16[1408,128], index: 1, kind: input, shape index: {}]
  %s2 = inlined_call_operand.vmem [shape: f32[7,128], index: 2, kind: input, shape index: {}]
  %s3 = inlined_call_operand.hbm [shape: f32[2,1,128], index: 3, kind: output, shape index: {}]
  %s4 = sld [smem:[#allocation0]]
  $region45: #{tcn_forward.1} parent=0
    _
  %s6 = ssub.s32 1, %s4
  %s7 = scalar_select 0, %s6, %s4
  $region1: #{tcn_forward.1} parent=0
    #allocation2 [shape = 'u8[1024]{0}', space=vmem, size = 0x400, scoped, tag = 'output window, operand 0']
    #allocation3 [shape = 's32[2]{0}', space=sflag, size = 0x8, scoped, tag = 'scoped memory for tcn_forward.1']
    %8 = vsyncpa [#allocation3], 0
    %s9 = scalar_lea.sflag [#allocation3], 1
    %10 = vsyncpa %s9, 0
    loop: start=0, step=1, limit=4
    $region2: #{tcn_forward.1} parent=1 // loop_pre_header
      _
    $region3: #{tcn_forward.1} parent=1 // loop_header
      %s12 = sphi 0, %s16
      %p13 = scmp.ge.s32.totalorder %s12, 4
      %s22 = sphi 0, %s24
      %s25 = sphi 0, %s22
      %s26 = sphi 0, %s25
      %s42 = sphi 0, %s26
      %s46 = sphi 0, %s46
      %s48 = sphi 0, %s46
      %s49 = sphi 0, %s48
      %s63 = sphi 0, %s49
      %s67 = sphi 0, %s67
      %s69 = sphi 0, %s67
      %s70 = sphi 0, %s69
      %s84 = sphi 0, %s70
      %s90 = sphi 0, %s92
      %s93 = sphi 0, %s90
      %s94 = sphi 0, %s93
      %s110 = sphi 0, %s94
    $region4: #{tcn_forward.1} parent=1 // loop_header_branch
      %15 = sbr.rel (%p13) target = $region8
    $region5: #{tcn_forward.1} parent=1 // loop_body
      %s17 = ssub.s32 %s12, 1
      %s18 = ssub.s32 %s12, 2
      %s19 = sadd.s32 %s12, 1
      %s20 = ssub.s32 %s12, %s19
      %p21 = scmp.eq.s32.totalorder %s20, 0
      %s23 = sadd.s32 %s22, 1
      %s24 = scalar_select %p21, %s22, %s23
      %p27 = pneg %p21
      %p28 = scmp.eq.s32.totalorder %s12, 1
      %p29 = por %p27, %p28
      %p30 = scmp.ne.s32.totalorder %s22, %s25
      %p31 = scmp.eq.s32.totalorder %s12, 0
      %p32 = por %p30, %p31
      %p33 = scmp.ne.s32.totalorder %s22, %s25
      %p34 = scmp.eq.s32.totalorder %s17, 1
      %p35 = por %p33, %p34
      %p36 = scmp.ne.s32.totalorder %s25, %s26
      %p37 = scmp.eq.s32.totalorder %s17, 0
      %p38 = por %p36, %p37
      %p39 = scmp.ne.s32.totalorder %s25, %s26
      %p40 = scmp.eq.s32.totalorder %s18, 1
      %p41 = por %p39, %p40
      %p43 = scmp.ne.s32.totalorder %s26, %s42
      %p44 = scmp.eq.s32.totalorder %s18, 0
      %p45 = por %p43, %p44
      %s47 = sadd.s32 %s46, 1
      %p50 = scmp.eq.s32.totalorder %s12, 1
      %p51 = scmp.ne.s32.totalorder %s46, %s48
      %p52 = scmp.eq.s32.totalorder %s12, 0
      %p53 = por %p51, %p52
      %p54 = scmp.ne.s32.totalorder %s46, %s48
      %p55 = scmp.eq.s32.totalorder %s17, 1
      %p56 = por %p54, %p55
      %p57 = scmp.ne.s32.totalorder %s48, %s49
      %p58 = scmp.eq.s32.totalorder %s17, 0
      %p59 = por %p57, %p58
      %p60 = scmp.ne.s32.totalorder %s48, %s49
      %p61 = scmp.eq.s32.totalorder %s18, 1
      %p62 = por %p60, %p61
      %p64 = scmp.ne.s32.totalorder %s49, %s63
      %p65 = scmp.eq.s32.totalorder %s18, 0
      %p66 = por %p64, %p65
      %s68 = sadd.s32 %s67, 1
      %p71 = scmp.eq.s32.totalorder %s12, 1
      %p72 = scmp.ne.s32.totalorder %s67, %s69
      %p73 = scmp.eq.s32.totalorder %s12, 0
      %p74 = por %p72, %p73
      %p75 = scmp.ne.s32.totalorder %s67, %s69
      %p76 = scmp.eq.s32.totalorder %s17, 1
      %p77 = por %p75, %p76
      %p78 = scmp.ne.s32.totalorder %s69, %s70
      %p79 = scmp.eq.s32.totalorder %s17, 0
      %p80 = por %p78, %p79
      %p81 = scmp.ne.s32.totalorder %s69, %s70
      %p82 = scmp.eq.s32.totalorder %s18, 1
      %p83 = por %p81, %p82
      %p85 = scmp.ne.s32.totalorder %s70, %s84
      %p86 = scmp.eq.s32.totalorder %s18, 0
      %p87 = por %p85, %p86
      %s88 = ssub.s32 %s12, %s19
      %p89 = scmp.eq.s32.totalorder %s88, 0
      %s91 = sadd.s32 %s90, 1
      %s92 = scalar_select %p89, %s90, %s91
      %p95 = pneg %p89
      %p96 = scmp.eq.s32.totalorder %s12, 1
      %p97 = por %p95, %p96
      %p98 = scmp.ne.s32.totalorder %s90, %s93
      %p99 = scmp.eq.s32.totalorder %s12, 0
      %p100 = por %p98, %p99
      %p101 = scmp.ne.s32.totalorder %s90, %s93
      %p102 = scmp.eq.s32.totalorder %s17, 1
      %p103 = por %p101, %p102
      %p104 = scmp.ne.s32.totalorder %s93, %s94
      %p105 = scmp.eq.s32.totalorder %s17, 0
      %p106 = por %p104, %p105
      %p107 = scmp.ne.s32.totalorder %s93, %s94
      %p108 = scmp.eq.s32.totalorder %s18, 1
      %p109 = por %p107, %p108
      %p111 = scmp.ne.s32.totalorder %s94, %s110
      %p112 = scmp.eq.s32.totalorder %s18, 0
      %p113 = por %p111, %p112
      %p114 = scmp.le.s32.totalorder 1, %s12
      %p115 = scmp.lt.s32.totalorder %s12, 3
      %p116 = pnand %p114, %p115
      %p117 = pneg %p116
      // Predicated region
      $region9: #{tcn_forward.1} parent=5 // pred_check
        _
      $region10: #{tcn_forward.1} parent=5 // pred_check_branch
        %119 = sbr.rel (%p116) target = $region12
      $region11: #{tcn_forward.1} parent=5 // pred_region
        %s120 = ssub.s32 %s12, 1
        // Predicated region
        $region13: #{tcn_forward.1} parent=11 // pred_check
          %p121 = pneg %p59
        $region14: #{tcn_forward.1} parent=11 // pred_check_branch
          %123 = sbr.rel (%p121) target = $region16
        $region15: #{tcn_forward.1} parent=11 // pred_region
          _
        $region16: #{tcn_forward.1} parent=11 // pred_fallthru
          _
        // Predicated region
        $region17: #{tcn_forward.1} parent=11 // pred_check
          %p124 = pneg %p80
        $region18: #{tcn_forward.1} parent=11 // pred_check_branch
          %126 = sbr.rel (%p124) target = $region20
        $region19: #{tcn_forward.1} parent=11 // pred_region
          _
        $region20: #{tcn_forward.1} parent=11 // pred_fallthru
          _
      $region12: #{tcn_forward.1} parent=5 // pred_fallthru
        _
      %p127 = scmp.lt.s32.totalorder %s12, 2
      // Predicated region
      $region21: #{tcn_forward.1} parent=5 // pred_check
        %p128 = pneg %p127
      $region22: #{tcn_forward.1} parent=5 // pred_check_branch
        %130 = sbr.rel (%p128) target = $region24
      $region23: #{tcn_forward.1} parent=5 // pred_region
        // Predicated region
        $region25: #{tcn_forward.1} parent=23 // pred_check
          %p131 = pneg %p32
        $region26: #{tcn_forward.1} parent=23 // pred_check_branch
          %133 = sbr.rel (%p131) target = $region28
        $region27: #{tcn_forward.1} parent=23 // pred_region
          %p134 = scmp.lt.s32.totalorder %s12, 1
          %s135 = scalar_select %p134, %s12, 1
          %s136 = smul.addr %s135, 2
          %s137 = smul.addr %s136, 8
          %s138 = scalar_lea.vmem %s0, %s137
        $region28: #{tcn_forward.1} parent=23 // pred_fallthru
          _
      $region24: #{tcn_forward.1} parent=5 // pred_fallthru
        _
      %p139 = scmp.le.s32.totalorder 1, %s12
      %p140 = scmp.lt.s32.totalorder %s12, 3
      %p141 = pnand %p139, %p140
      %p142 = pneg %p141
      // Predicated region
      $region29: #{tcn_forward.1} parent=5 // pred_check
        _
      $region30: #{tcn_forward.1} parent=5 // pred_check_branch
        %144 = sbr.rel (%p141) target = $region32
      $region31: #{tcn_forward.1} parent=5 // pred_region
        %s145 = ssub.s32 %s12, 1
        %p146 = scmp.lt.s32.totalorder %s17, 1
        %s147 = scalar_select %p146, %s17, 1
        %s148 = smul.addr %s147, 2
        %s149 = smul.addr %s148, 8
        %s150 = scalar_lea.vmem %s0, %s149
        %p151 = pneg %p38
        %p152 = pneg %p35
        %p153 = pneg %p59
        %p154 = pneg %p56
        %p155 = pneg %p80
        %p156 = pneg %p77
        %p157 = pneg %p106
        %p158 = pneg %p103
        %s159 = sand.u32 %s93, 1
        %s160 = scalar_lea.sflag [#allocation3], %s159
        %s161 = sand.u32 %s93, 1
        %s162 = scalar_lea.vmem [#allocation2], %s161
        %p163 = scmp.lt.s32.totalorder %s17, 1
        %s164 = scalar_select %p163, %s17, 1
        %s165 = smul.addr %s164, 2
        %s166 = smul.addr %s165, 8
        %s167 = scalar_lea.vmem %s0, %s166
        %v169 = vld [vmem:[%s167] sm:$0xff]
        %v170 = vld [vmem:[%s167 + $0x8] sm:$0xff]
        %v171 = vlaneseq
        %v172 = vand.u32 %v171, 127
        %vm173 = vcmp.lt.s32.totalorder %v172, 8
        %v174 = vsel %vm173, 1, 0
        %v175 = vcvt.s32.f32 %v174
        %v176 = vpack.c.bf16 %v170, %v169
        %v177 = vld [vmem:[%s1 + $0x100] sm:$0xf]
        %v178 = vld [vmem:[%s1 + $0x104] sm:$0xf]
        %v179 = vld [vmem:[%s1 + $0x108] sm:$0xf]
        %v180 = vld [vmem:[%s1 + $0x10c] sm:$0xf]
        %v181 = vld [vmem:[%s1 + $0x110] sm:$0xf]
        %v182 = vld [vmem:[%s1 + $0x114] sm:$0xf]
        %v183 = vld [vmem:[%s1 + $0x118] sm:$0xf]
        %v184 = vld [vmem:[%s1 + $0x11c] sm:$0xf]
        %v185 = vld [vmem:[%s1 + $0x120] sm:$0xf]
        %v186 = vld [vmem:[%s1 + $0x124] sm:$0xf]
        %v187 = vld [vmem:[%s1 + $0x128] sm:$0xf]
        %v188 = vld [vmem:[%s1 + $0x12c] sm:$0xf]
        %v189 = vld [vmem:[%s1 + $0x130] sm:$0xf]
        %v190 = vld [vmem:[%s1 + $0x134] sm:$0xf]
        %v191 = vld [vmem:[%s1 + $0x138] sm:$0xf]
        %v192 = vld [vmem:[%s1 + $0x13c] sm:$0xf]
        %v193 = vld [vmem:[%s2 + $0x2] sm:$0x1]
        %v194 = vlaneseq
        %v195 = vshrl.u32 %v194, 7
        %v196 = vsub.s32 0, %v195
        %v197 = vrot.slane %v193, %v196
        %v214 = vunpack.c.l.b16 %v177
        %v215 = vunpack.c.l.b16 %v178
        %v216 = vunpack.c.l.b16 %v179
        %v217 = vunpack.c.l.b16 %v180
        %v218 = vunpack.c.l.b16 %v181
        %v219 = vunpack.c.l.b16 %v182
        %v220 = vunpack.c.l.b16 %v183
        %v221 = vunpack.c.l.b16 %v184
        %v222 = vunpack.c.l.b16 %v185
        %v223 = vunpack.c.l.b16 %v186
        %v224 = vunpack.c.l.b16 %v187
        %v225 = vunpack.c.l.b16 %v188
        %v226 = vunpack.c.l.b16 %v189
        %v227 = vunpack.c.l.b16 %v190
        %v228 = vunpack.c.l.b16 %v191
        %v229 = vunpack.c.l.b16 %v192
        %v230 = vpack.c.b16 %v215, %v214
        %v231 = vpack.c.b16 %v217, %v216
        %v232 = vpack.c.b16 %v219, %v218
        %v233 = vpack.c.b16 %v221, %v220
        %v234 = vpack.c.b16 %v223, %v222
        %v235 = vpack.c.b16 %v225, %v224
        %v236 = vpack.c.b16 %v227, %v226
        %v237 = vpack.c.b16 %v229, %v228
        %246 = vmatprep.subr.bf16.mxu0 0
        %247 = vmatpush1.bf16.msra.mxu0 %v230
        %248 = vmatprep.subr.bf16.mxu0 0
        %249 = vmatpush1.bf16.msra.mxu0 %v231
        %250 = vmatprep.subr.bf16.mxu0 0
        %251 = vmatpush1.bf16.msra.mxu0 %v232
        %252 = vmatprep.subr.bf16.mxu0 0
        %253 = vmatpush1.bf16.msra.mxu0 %v233
        %254 = vmatprep.subr.bf16.mxu0 0
        %255 = vmatpush1.bf16.msra.mxu0 %v234
        %256 = vmatprep.subr.bf16.mxu0 0
        %257 = vmatpush1.bf16.msra.mxu0 %v235
        %258 = vmatprep.subr.bf16.mxu0 0
        %259 = vmatpush1.bf16.msra.mxu0 %v236
        %260 = vmatprep.subr.bf16.mxu0 0
        %261 = vmatpush1.bf16.msra.mxu0 %v237
        %262 = vmatprep.subr.bf16.mxu0 0
        %263 = vmatpush1.bf16.msra.mxu0 0
        %264 = vmatprep.subr.bf16.mxu0 0
        %265 = vmatpush1.bf16.msra.mxu0 0
        %266 = vmatprep.subr.bf16.mxu0 0
        %267 = vmatpush1.bf16.msra.mxu0 0
        %268 = vmatprep.subr.bf16.mxu0 0
        %269 = vmatpush1.bf16.msra.mxu0 0
        %270 = vmatprep.subr.bf16.mxu0 0
        %271 = vmatpush1.bf16.msra.mxu0 0
        %272 = vmatprep.subr.bf16.mxu0 0
        %273 = vmatpush1.bf16.msra.mxu0 0
        %274 = vmatprep.subr.bf16.mxu0 0
        %275 = vmatpush1.bf16.msra.mxu0 0
        %276 = vmatprep.subr.bf16.mxu0 0
        %277 = vmatpush1.bf16.msra.mxu0 0
        %278 = vmatprep.mubr.bf16.mxu0 0
        %279 = vmatmul.mubr.bf16.gmra.mrb[0].mxu0 %v176
        %v280 = vpop.f32.mrb[0].mxu0
        %v281 = vadd.f32 %v197, %v280
        %v282 = vpop.f32.mrb[0].mxu0
        %v283 = vpop.f32.mrb[0].mxu0
        %v284 = vadd.f32 %v197, %v283
        %v285 = vpop.f32.mrb[0].mxu0
        %286 = vdwg.mxu0
        %vm289 = vcmask 1040384
        %v290 = vrot.slane %v169, 7
        %v291 = vrot.slane %v170, 7
        %v292 = vsel %vm289, %v290, %v291
        %v295 = vsel %vm289, 0.0, %v290
        %v296 = vpack.c.bf16 %v292, %v295
        %v297 = vld [vmem:[%s1] sm:$0xf]
        %v298 = vld [vmem:[%s1 + $0x4] sm:$0xf]
        %v299 = vld [vmem:[%s1 + $0x8] sm:$0xf]
        %v300 = vld [vmem:[%s1 + $0xc] sm:$0xf]
        %v301 = vld [vmem:[%s1 + $0x10] sm:$0xf]
        %v302 = vld [vmem:[%s1 + $0x14] sm:$0xf]
        %v303 = vld [vmem:[%s1 + $0x18] sm:$0xf]
        %v304 = vld [vmem:[%s1 + $0x1c] sm:$0xf]
        %v305 = vld [vmem:[%s1 + $0x20] sm:$0xf]
        %v306 = vld [vmem:[%s1 + $0x24] sm:$0xf]
        %v307 = vld [vmem:[%s1 + $0x28] sm:$0xf]
        %v308 = vld [vmem:[%s1 + $0x2c] sm:$0xf]
        %v309 = vld [vmem:[%s1 + $0x30] sm:$0xf]
        %v310 = vld [vmem:[%s1 + $0x34] sm:$0xf]
        %v311 = vld [vmem:[%s1 + $0x38] sm:$0xf]
        %v312 = vld [vmem:[%s1 + $0x3c] sm:$0xf]
        %v313 = vld [vmem:[%s1 + $0x40] sm:$0xf]
        %v314 = vld [vmem:[%s1 + $0x44] sm:$0xf]
        %v315 = vld [vmem:[%s1 + $0x48] sm:$0xf]
        %v316 = vld [vmem:[%s1 + $0x4c] sm:$0xf]
        %v317 = vld [vmem:[%s1 + $0x50] sm:$0xf]
        %v318 = vld [vmem:[%s1 + $0x54] sm:$0xf]
        %v319 = vld [vmem:[%s1 + $0x58] sm:$0xf]
        %v320 = vld [vmem:[%s1 + $0x5c] sm:$0xf]
        %v321 = vld [vmem:[%s1 + $0x60] sm:$0xf]
        %v322 = vld [vmem:[%s1 + $0x64] sm:$0xf]
        %v323 = vld [vmem:[%s1 + $0x68] sm:$0xf]
        %v324 = vld [vmem:[%s1 + $0x6c] sm:$0xf]
        %v325 = vld [vmem:[%s1 + $0x70] sm:$0xf]
        %v326 = vld [vmem:[%s1 + $0x74] sm:$0xf]
        %v327 = vld [vmem:[%s1 + $0x78] sm:$0xf]
        %v328 = vld [vmem:[%s1 + $0x7c] sm:$0xf]
        %v329 = vld [vmem:[%s2] sm:$0x1]
        %v330 = vlaneseq
        %v331 = vshrl.u32 %v330, 7
        %v332 = vsub.s32 0, %v331
        %v333 = vrot.slane %v329, %v332
        %v366 = vunpack.c.l.b16 %v297
        %v367 = vunpack.c.l.b16 %v298
        %v368 = vunpack.c.l.b16 %v299
        %v369 = vunpack.c.l.b16 %v300
        %v370 = vunpack.c.l.b16 %v301
        %v371 = vunpack.c.l.b16 %v302
        %v372 = vunpack.c.l.b16 %v303
        %v373 = vunpack.c.l.b16 %v304
        %v374 = vunpack.c.l.b16 %v305
        %v375 = vunpack.c.l.b16 %v306
        %v376 = vunpack.c.l.b16 %v307
        %v377 = vunpack.c.l.b16 %v308
        %v378 = vunpack.c.l.b16 %v309
        %v379 = vunpack.c.l.b16 %v310
        %v380 = vunpack.c.l.b16 %v311
        %v381 = vunpack.c.l.b16 %v312
        %v382 = vunpack.c.l.b16 %v313
        %v383 = vunpack.c.l.b16 %v314
        %v384 = vunpack.c.l.b16 %v315
        %v385 = vunpack.c.l.b16 %v316
        %v386 = vunpack.c.l.b16 %v317
        %v387 = vunpack.c.l.b16 %v318
        %v388 = vunpack.c.l.b16 %v319
        %v389 = vunpack.c.l.b16 %v320
        %v390 = vunpack.c.l.b16 %v321
        %v391 = vunpack.c.l.b16 %v322
        %v392 = vunpack.c.l.b16 %v323
        %v393 = vunpack.c.l.b16 %v324
        %v394 = vunpack.c.l.b16 %v325
        %v395 = vunpack.c.l.b16 %v326
        %v396 = vunpack.c.l.b16 %v327
        %v397 = vunpack.c.l.b16 %v328
        %v398 = vpack.c.b16 %v367, %v366
        %v399 = vpack.c.b16 %v369, %v368
        %v400 = vpack.c.b16 %v371, %v370
        %v401 = vpack.c.b16 %v373, %v372
        %v402 = vpack.c.b16 %v375, %v374
        %v403 = vpack.c.b16 %v377, %v376
        %v404 = vpack.c.b16 %v379, %v378
        %v405 = vpack.c.b16 %v381, %v380
        %v406 = vpack.c.b16 %v383, %v382
        %v407 = vpack.c.b16 %v385, %v384
        %v408 = vpack.c.b16 %v387, %v386
        %v409 = vpack.c.b16 %v389, %v388
        %v410 = vpack.c.b16 %v391, %v390
        %v411 = vpack.c.b16 %v393, %v392
        %v412 = vpack.c.b16 %v395, %v394
        %v413 = vpack.c.b16 %v397, %v396
        %430 = vmatprep.subr.bf16.mxu0 0
        %431 = vmatpush1.bf16.msra.mxu0 %v398
        %432 = vmatprep.subr.bf16.mxu0 0
        %433 = vmatpush1.bf16.msra.mxu0 %v399
        %434 = vmatprep.subr.bf16.mxu0 0
        %435 = vmatpush1.bf16.msra.mxu0 %v400
        %436 = vmatprep.subr.bf16.mxu0 0
        %437 = vmatpush1.bf16.msra.mxu0 %v401
        %438 = vmatprep.subr.bf16.mxu0 0
        %439 = vmatpush1.bf16.msra.mxu0 %v402
        %440 = vmatprep.subr.bf16.mxu0 0
        %441 = vmatpush1.bf16.msra.mxu0 %v403
        %442 = vmatprep.subr.bf16.mxu0 0
        %443 = vmatpush1.bf16.msra.mxu0 %v404
        %444 = vmatprep.subr.bf16.mxu0 0
        %445 = vmatpush1.bf16.msra.mxu0 %v405
        %446 = vmatprep.subr.bf16.mxu0 0
        %447 = vmatpush1.bf16.msra.mxu0 %v406
        %448 = vmatprep.subr.bf16.mxu0 0
        %449 = vmatpush1.bf16.msra.mxu0 %v407
        %450 = vmatprep.subr.bf16.mxu0 0
        %451 = vmatpush1.bf16.msra.mxu0 %v408
        %452 = vmatprep.subr.bf16.mxu0 0
        %453 = vmatpush1.bf16.msra.mxu0 %v409
        %454 = vmatprep.subr.bf16.mxu0 0
        %455 = vmatpush1.bf16.msra.mxu0 %v410
        %456 = vmatprep.subr.bf16.mxu0 0
        %457 = vmatpush1.bf16.msra.mxu0 %v411
        %458 = vmatprep.subr.bf16.mxu0 0
        %459 = vmatpush1.bf16.msra.mxu0 %v412
        %460 = vmatprep.subr.bf16.mxu0 0
        %461 = vmatpush1.bf16.msra.mxu0 %v413
        %462 = vmatprep.mubr.bf16.mxu0 %v176
        %463 = vmatmul.mubr.bf16.gmra.mrb[0].mxu0 %v296
        %v464 = vpop.f32.mrb[0].mxu0
        %v465 = vadd.f32 %v333, %v464
        %v466 = vpop.f32.mrb[0].mxu0
        %v467 = vpop.f32.mrb[0].mxu0
        %v468 = vadd.f32 %v333, %v467
        %v469 = vpop.f32.mrb[0].mxu0
        %470 = vdwg.mxu0
        %v471 = vadd.f32 %v465, %v468
        %472 = vadd.xlane.f32.xlu0 %v471
        %v473 = vpop.xlane.xlu0 %472
        %v474 = vrot.slane %v473, 4
        %v475 = vadd.f32 %v473, %v474
        %v476 = vrot.slane %v475, 2
        %v477 = vadd.f32 %v475, %v476
        %v478 = vrot.slane %v477, 1
        %v479 = vadd.f32 %v477, %v478
        %v480 = vmul.f32 %v479, 0.0078125
        %v481 = vsub.f32 %v465, %v480
        %v482 = vsub.f32 %v468, %v480
        %v483 = vmul.f32 %v481, %v175
        %v484 = vmul.f32 %v482, %v175
        %v485 = vmul.f32 %v483, %v483
        %v486 = vmul.f32 %v484, %v484
        %v487 = vadd.f32 %v485, %v486
        %488 = vadd.xlane.f32.xlu0 %v487
        %v489 = vpop.xlane.xlu0 %488
        %v490 = vrot.slane %v489, 4
        %v491 = vadd.f32 %v489, %v490
        %v492 = vrot.slane %v491, 2
        %v493 = vadd.f32 %v491, %v492
        %v494 = vrot.slane %v493, 1
        %v495 = vadd.f32 %v493, %v494
        %v496 = vmul.f32 %v495, 0.0078125
        %v497 = vadd.f32 %v496, 1e-05
        %v498 = vrsqrt.pop %v497
        %v499 = vmul.f32 %v483, %v498
        %v500 = vmul.f32 %v484, %v498
        %v501 = vmax.f32 %v499, 0.0
        %v502 = vmax.f32 %v500, 0.0
        %v503 = vpack.c.bf16 %v502, %v501
        %v506 = vrot.slane %v501, 7
        %v507 = vrot.slane %v502, 7
        %v508 = vsel %vm289, %v506, %v507
        %v511 = vsel %vm289, 0.0, %v506
        %v512 = vpack.c.bf16 %v508, %v511
        %v513 = vld [vmem:[%s1 + $0x80] sm:$0xf]
        %v514 = vld [vmem:[%s1 + $0x84] sm:$0xf]
        %v515 = vld [vmem:[%s1 + $0x88] sm:$0xf]
        %v516 = vld [vmem:[%s1 + $0x8c] sm:$0xf]
        %v517 = vld [vmem:[%s1 + $0x90] sm:$0xf]
        %v518 = vld [vmem:[%s1 + $0x94] sm:$0xf]
        %v519 = vld [vmem:[%s1 + $0x98] sm:$0xf]
        %v520 = vld [vmem:[%s1 + $0x9c] sm:$0xf]
        %v521 = vld [vmem:[%s1 + $0xa0] sm:$0xf]
        %v522 = vld [vmem:[%s1 + $0xa4] sm:$0xf]
        %v523 = vld [vmem:[%s1 + $0xa8] sm:$0xf]
        %v524 = vld [vmem:[%s1 + $0xac] sm:$0xf]
        %v525 = vld [vmem:[%s1 + $0xb0] sm:$0xf]
        %v526 = vld [vmem:[%s1 + $0xb4] sm:$0xf]
        %v527 = vld [vmem:[%s1 + $0xb8] sm:$0xf]
        %v528 = vld [vmem:[%s1 + $0xbc] sm:$0xf]
        %v529 = vld [vmem:[%s1 + $0xc0] sm:$0xf]
        %v530 = vld [vmem:[%s1 + $0xc4] sm:$0xf]
        %v531 = vld [vmem:[%s1 + $0xc8] sm:$0xf]
        %v532 = vld [vmem:[%s1 + $0xcc] sm:$0xf]
        %v533 = vld [vmem:[%s1 + $0xd0] sm:$0xf]
        %v534 = vld [vmem:[%s1 + $0xd4] sm:$0xf]
        %v535 = vld [vmem:[%s1 + $0xd8] sm:$0xf]
        %v536 = vld [vmem:[%s1 + $0xdc] sm:$0xf]
        %v537 = vld [vmem:[%s1 + $0xe0] sm:$0xf]
        %v538 = vld [vmem:[%s1 + $0xe4] sm:$0xf]
        %v539 = vld [vmem:[%s1 + $0xe8] sm:$0xf]
        %v540 = vld [vmem:[%s1 + $0xec] sm:$0xf]
        %v541 = vld [vmem:[%s1 + $0xf0] sm:$0xf]
        %v542 = vld [vmem:[%s1 + $0xf4] sm:$0xf]
        %v543 = vld [vmem:[%s1 + $0xf8] sm:$0xf]
        %v544 = vld [vmem:[%s1 + $0xfc] sm:$0xf]
        %v545 = vld [vmem:[%s2 + $0x1] sm:$0x1]
        %v546 = vlaneseq
        %v547 = vshrl.u32 %v546, 7
        %v548 = vsub.s32 0, %v547
        %v549 = vrot.slane %v545, %v548
        %v582 = vunpack.c.l.b16 %v513
        %v583 = vunpack.c.l.b16 %v514
        %v584 = vunpack.c.l.b16 %v515
        %v585 = vunpack.c.l.b16 %v516
        %v586 = vunpack.c.l.b16 %v517
        %v587 = vunpack.c.l.b16 %v518
        %v588 = vunpack.c.l.b16 %v519
        %v589 = vunpack.c.l.b16 %v520
        %v590 = vunpack.c.l.b16 %v521
        %v591 = vunpack.c.l.b16 %v522
        %v592 = vunpack.c.l.b16 %v523
        %v593 = vunpack.c.l.b16 %v524
        %v594 = vunpack.c.l.b16 %v525
        %v595 = vunpack.c.l.b16 %v526
        %v596 = vunpack.c.l.b16 %v527
        %v597 = vunpack.c.l.b16 %v528
        %v598 = vunpack.c.l.b16 %v529
        %v599 = vunpack.c.l.b16 %v530
        %v600 = vunpack.c.l.b16 %v531
        %v601 = vunpack.c.l.b16 %v532
        %v602 = vunpack.c.l.b16 %v533
        %v603 = vunpack.c.l.b16 %v534
        %v604 = vunpack.c.l.b16 %v535
        %v605 = vunpack.c.l.b16 %v536
        %v606 = vunpack.c.l.b16 %v537
        %v607 = vunpack.c.l.b16 %v538
        %v608 = vunpack.c.l.b16 %v539
        %v609 = vunpack.c.l.b16 %v540
        %v610 = vunpack.c.l.b16 %v541
        %v611 = vunpack.c.l.b16 %v542
        %v612 = vunpack.c.l.b16 %v543
        %v613 = vunpack.c.l.b16 %v544
        %v614 = vpack.c.b16 %v583, %v582
        %v615 = vpack.c.b16 %v585, %v584
        %v616 = vpack.c.b16 %v587, %v586
        %v617 = vpack.c.b16 %v589, %v588
        %v618 = vpack.c.b16 %v591, %v590
        %v619 = vpack.c.b16 %v593, %v592
        %v620 = vpack.c.b16 %v595, %v594
        %v621 = vpack.c.b16 %v597, %v596
        %v622 = vpack.c.b16 %v599, %v598
        %v623 = vpack.c.b16 %v601, %v600
        %v624 = vpack.c.b16 %v603, %v602
        %v625 = vpack.c.b16 %v605, %v604
        %v626 = vpack.c.b16 %v607, %v606
        %v627 = vpack.c.b16 %v609, %v608
        %v628 = vpack.c.b16 %v611, %v610
        %v629 = vpack.c.b16 %v613, %v612
        %646 = vmatprep.subr.bf16.mxu0 0
        %647 = vmatpush1.bf16.msra.mxu0 %v614
        %648 = vmatprep.subr.bf16.mxu0 0
        %649 = vmatpush1.bf16.msra.mxu0 %v615
        %650 = vmatprep.subr.bf16.mxu0 0
        %651 = vmatpush1.bf16.msra.mxu0 %v616
        %652 = vmatprep.subr.bf16.mxu0 0
        %653 = vmatpush1.bf16.msra.mxu0 %v617
        %654 = vmatprep.subr.bf16.mxu0 0
        %655 = vmatpush1.bf16.msra.mxu0 %v618
        %656 = vmatprep.subr.bf16.mxu0 0
        %657 = vmatpush1.bf16.msra.mxu0 %v619
        %658 = vmatprep.subr.bf16.mxu0 0
        %659 = vmatpush1.bf16.msra.mxu0 %v620
        %660 = vmatprep.subr.bf16.mxu0 0
        %661 = vmatpush1.bf16.msra.mxu0 %v621
        %662 = vmatprep.subr.bf16.mxu0 0
        %663 = vmatpush1.bf16.msra.mxu0 %v622
        %664 = vmatprep.subr.bf16.mxu0 0
        %665 = vmatpush1.bf16.msra.mxu0 %v623
        %666 = vmatprep.subr.bf16.mxu0 0
        %667 = vmatpush1.bf16.msra.mxu0 %v624
        %668 = vmatprep.subr.bf16.mxu0 0
        %669 = vmatpush1.bf16.msra.mxu0 %v625
        %670 = vmatprep.subr.bf16.mxu0 0
        %671 = vmatpush1.bf16.msra.mxu0 %v626
        %672 = vmatprep.subr.bf16.mxu0 0
        %673 = vmatpush1.bf16.msra.mxu0 %v627
        %674 = vmatprep.subr.bf16.mxu0 0
        %675 = vmatpush1.bf16.msra.mxu0 %v628
        %676 = vmatprep.subr.bf16.mxu0 0
        %677 = vmatpush1.bf16.msra.mxu0 %v629
        %678 = vmatprep.mubr.bf16.mxu0 %v503
        %679 = vmatmul.mubr.bf16.gmra.mrb[0].mxu0 %v512
        %v680 = vpop.f32.mrb[0].mxu0
        %v681 = vadd.f32 %v549, %v680
        %v682 = vpop.f32.mrb[0].mxu0
        %v683 = vpop.f32.mrb[0].mxu0
        %v684 = vadd.f32 %v549, %v683
        %v685 = vpop.f32.mrb[0].mxu0
        %686 = vdwg.mxu0
        %v687 = vadd.f32 %v681, %v684
        %688 = vadd.xlane.f32.xlu0 %v687
        %v689 = vpop.xlane.xlu0 %688
        %v690 = vrot.slane %v689, 4
        %v691 = vadd.f32 %v689, %v690
        %v692 = vrot.slane %v691, 2
        %v693 = vadd.f32 %v691, %v692
        %v694 = vrot.slane %v693, 1
        %v695 = vadd.f32 %v693, %v694
        %v696 = vmul.f32 %v695, 0.0078125
        %v697 = vsub.f32 %v681, %v696
        %v698 = vsub.f32 %v684, %v696
        %v699 = vmul.f32 %v697, %v175
        %v700 = vmul.f32 %v698, %v175
        %v701 = vmul.f32 %v699, %v699
        %v702 = vmul.f32 %v700, %v700
        %v703 = vadd.f32 %v701, %v702
        %704 = vadd.xlane.f32.xlu0 %v703
        %v705 = vpop.xlane.xlu0 %704
        %v706 = vrot.slane %v705, 4
        %v707 = vadd.f32 %v705, %v706
        %v708 = vrot.slane %v707, 2
        %v709 = vadd.f32 %v707, %v708
        %v710 = vrot.slane %v709, 1
        %v711 = vadd.f32 %v709, %v710
        %v712 = vmul.f32 %v711, 0.0078125
        %v713 = vadd.f32 %v712, 1e-05
        %v714 = vrsqrt.pop %v713
        %v715 = vmul.f32 %v699, %v714
        %v716 = vmul.f32 %v700, %v714
        %v717 = vmax.f32 %v715, 0.0
        %v718 = vmax.f32 %v716, 0.0
        %v719 = vadd.f32 %v717, %v281
        %v720 = vadd.f32 %v718, %v284
        %v721 = vmax.f32 %v719, 0.0
        %v722 = vmax.f32 %v720, 0.0
        %vm723 = vcmp.lt.s32.totalorder %v172, 16
        %v724 = vsel %vm723, 1, 0
        %v725 = vcvt.s32.f32 %v724
        %v726 = vpack.c.bf16 %v722, %v721
        %v727 = vld [vmem:[%s1 + $0x240] sm:$0xf]
        %v728 = vld [vmem:[%s1 + $0x244] sm:$0xf]
        %v729 = vld [vmem:[%s1 + $0x248] sm:$0xf]
        %v730 = vld [vmem:[%s1 + $0x24c] sm:$0xf]
        %v731 = vld [vmem:[%s1 + $0x250] sm:$0xf]
        %v732 = vld [vmem:[%s1 + $0x254] sm:$0xf]
        %v733 = vld [vmem:[%s1 + $0x258] sm:$0xf]
        %v734 = vld [vmem:[%s1 + $0x25c] sm:$0xf]
        %v735 = vld [vmem:[%s1 + $0x260] sm:$0xf]
        %v736 = vld [vmem:[%s1 + $0x264] sm:$0xf]
        %v737 = vld [vmem:[%s1 + $0x268] sm:$0xf]
        %v738 = vld [vmem:[%s1 + $0x26c] sm:$0xf]
        %v739 = vld [vmem:[%s1 + $0x270] sm:$0xf]
        %v740 = vld [vmem:[%s1 + $0x274] sm:$0xf]
        %v741 = vld [vmem:[%s1 + $0x278] sm:$0xf]
        %v742 = vld [vmem:[%s1 + $0x27c] sm:$0xf]
        %v743 = vld [vmem:[%s2 + $0x5] sm:$0x1]
        %v744 = vlaneseq
        %v745 = vshrl.u32 %v744, 7
        %v746 = vsub.s32 0, %v745
        %v747 = vrot.slane %v743, %v746
        %v764 = vunpack.c.l.b16 %v727
        %v765 = vunpack.c.l.b16 %v728
        %v766 = vunpack.c.l.b16 %v729
        %v767 = vunpack.c.l.b16 %v730
        %v768 = vunpack.c.l.b16 %v731
        %v769 = vunpack.c.l.b16 %v732
        %v770 = vunpack.c.l.b16 %v733
        %v771 = vunpack.c.l.b16 %v734
        %v772 = vunpack.c.l.b16 %v735
        %v773 = vunpack.c.l.b16 %v736
        %v774 = vunpack.c.l.b16 %v737
        %v775 = vunpack.c.l.b16 %v738
        %v776 = vunpack.c.l.b16 %v739
        %v777 = vunpack.c.l.b16 %v740
        %v778 = vunpack.c.l.b16 %v741
        %v779 = vunpack.c.l.b16 %v742
        %v780 = vpack.c.b16 %v765, %v764
        %v781 = vpack.c.b16 %v767, %v766
        %v782 = vpack.c.b16 %v769, %v768
        %v783 = vpack.c.b16 %v771, %v770
        %v784 = vpack.c.b16 %v773, %v772
        %v785 = vpack.c.b16 %v775, %v774
        %v786 = vpack.c.b16 %v777, %v776
        %v787 = vpack.c.b16 %v779, %v778
        %796 = vmatprep.subr.bf16.mxu0 0
        %797 = vmatpush1.bf16.msra.mxu0 %v780
        %798 = vmatprep.subr.bf16.mxu0 0
        %799 = vmatpush1.bf16.msra.mxu0 %v781
        %800 = vmatprep.subr.bf16.mxu0 0
        %801 = vmatpush1.bf16.msra.mxu0 %v782
        %802 = vmatprep.subr.bf16.mxu0 0
        %803 = vmatpush1.bf16.msra.mxu0 %v783
        %804 = vmatprep.subr.bf16.mxu0 0
        %805 = vmatpush1.bf16.msra.mxu0 %v784
        %806 = vmatprep.subr.bf16.mxu0 0
        %807 = vmatpush1.bf16.msra.mxu0 %v785
        %808 = vmatprep.subr.bf16.mxu0 0
        %809 = vmatpush1.bf16.msra.mxu0 %v786
        %810 = vmatprep.subr.bf16.mxu0 0
        %811 = vmatpush1.bf16.msra.mxu0 %v787
        %812 = vmatprep.subr.bf16.mxu0 0
        %813 = vmatpush1.bf16.msra.mxu0 0
        %814 = vmatprep.subr.bf16.mxu0 0
        %815 = vmatpush1.bf16.msra.mxu0 0
        %816 = vmatprep.subr.bf16.mxu0 0
        %817 = vmatpush1.bf16.msra.mxu0 0
        %818 = vmatprep.subr.bf16.mxu0 0
        %819 = vmatpush1.bf16.msra.mxu0 0
        %820 = vmatprep.subr.bf16.mxu0 0
        %821 = vmatpush1.bf16.msra.mxu0 0
        %822 = vmatprep.subr.bf16.mxu0 0
        %823 = vmatpush1.bf16.msra.mxu0 0
        %824 = vmatprep.subr.bf16.mxu0 0
        %825 = vmatpush1.bf16.msra.mxu0 0
        %826 = vmatprep.subr.bf16.mxu0 0
        %827 = vmatpush1.bf16.msra.mxu0 0
        %828 = vmatprep.mubr.bf16.mxu0 0
        %829 = vmatmul.mubr.bf16.gmra.mrb[0].mxu0 %v726
        %v830 = vpop.f32.mrb[0].mxu0
        %v831 = vpop.f32.mrb[0].mxu0
        %v832 = vpop.f32.mrb[0].mxu0
        %v833 = vadd.f32 %v747, %v832
        %v834 = vpop.f32.mrb[0].mxu0
        %835 = vdwg.mxu0
        %vm838 = vcmask 1041408
        %v839 = vrot.slane %v721, 6
        %v840 = vrot.slane %v722, 6
        %v841 = vsel %vm838, %v839, %v840
        %v844 = vsel %vm838, 0.0, %v839
        %v845 = vpack.c.bf16 %v841, %v844
        %v846 = vld [vmem:[%s1 + $0x140] sm:$0xf]
        %v847 = vld [vmem:[%s1 + $0x144] sm:$0xf]
        %v848 = vld [vmem:[%s1 + $0x148] sm:$0xf]
        %v849 = vld [vmem:[%s1 + $0x14c] sm:$0xf]
        %v850 = vld [vmem:[%s1 + $0x150] sm:$0xf]
        %v851 = vld [vmem:[%s1 + $0x154] sm:$0xf]
        %v852 = vld [vmem:[%s1 + $0x158] sm:$0xf]
        %v853 = vld [vmem:[%s1 + $0x15c] sm:$0xf]
        %v854 = vld [vmem:[%s1 + $0x160] sm:$0xf]
        %v855 = vld [vmem:[%s1 + $0x164] sm:$0xf]
        %v856 = vld [vmem:[%s1 + $0x168] sm:$0xf]
        %v857 = vld [vmem:[%s1 + $0x16c] sm:$0xf]
        %v858 = vld [vmem:[%s1 + $0x170] sm:$0xf]
        %v859 = vld [vmem:[%s1 + $0x174] sm:$0xf]
        %v860 = vld [vmem:[%s1 + $0x178] sm:$0xf]
        %v861 = vld [vmem:[%s1 + $0x17c] sm:$0xf]
        %v862 = vld [vmem:[%s1 + $0x180] sm:$0xf]
        %v863 = vld [vmem:[%s1 + $0x184] sm:$0xf]
        %v864 = vld [vmem:[%s1 + $0x188] sm:$0xf]
        %v865 = vld [vmem:[%s1 + $0x18c] sm:$0xf]
        %v866 = vld [vmem:[%s1 + $0x190] sm:$0xf]
        %v867 = vld [vmem:[%s1 + $0x194] sm:$0xf]
        %v868 = vld [vmem:[%s1 + $0x198] sm:$0xf]
        %v869 = vld [vmem:[%s1 + $0x19c] sm:$0xf]
        %v870 = vld [vmem:[%s1 + $0x1a0] sm:$0xf]
        %v871 = vld [vmem:[%s1 + $0x1a4] sm:$0xf]
        %v872 = vld [vmem:[%s1 + $0x1a8] sm:$0xf]
        %v873 = vld [vmem:[%s1 + $0x1ac] sm:$0xf]
        %v874 = vld [vmem:[%s1 + $0x1b0] sm:$0xf]
        %v875 = vld [vmem:[%s1 + $0x1b4] sm:$0xf]
        %v876 = vld [vmem:[%s1 + $0x1b8] sm:$0xf]
        %v877 = vld [vmem:[%s1 + $0x1bc] sm:$0xf]
        %v878 = vld [vmem:[%s2 + $0x3] sm:$0x1]
        %v879 = vlaneseq
        %v880 = vshrl.u32 %v879, 7
        %v881 = vsub.s32 0, %v880
        %v882 = vrot.slane %v878, %v881
        %v915 = vunpack.c.l.b16 %v846
        %v916 = vunpack.c.l.b16 %v847
        %v917 = vunpack.c.l.b16 %v848
        %v918 = vunpack.c.l.b16 %v849
        %v919 = vunpack.c.l.b16 %v850
        %v920 = vunpack.c.l.b16 %v851
        %v921 = vunpack.c.l.b16 %v852
        %v922 = vunpack.c.l.b16 %v853
        %v923 = vunpack.c.l.b16 %v854
        %v924 = vunpack.c.l.b16 %v855
        %v925 = vunpack.c.l.b16 %v856
        %v926 = vunpack.c.l.b16 %v857
        %v927 = vunpack.c.l.b16 %v858
        %v928 = vunpack.c.l.b16 %v859
        %v929 = vunpack.c.l.b16 %v860
        %v930 = vunpack.c.l.b16 %v861
        %v931 = vunpack.c.l.b16 %v862
        %v932 = vunpack.c.l.b16 %v863
        %v933 = vunpack.c.l.b16 %v864
        %v934 = vunpack.c.l.b16 %v865
        %v935 = vunpack.c.l.b16 %v866
        %v936 = vunpack.c.l.b16 %v867
        %v937 = vunpack.c.l.b16 %v868
        %v938 = vunpack.c.l.b16 %v869
        %v939 = vunpack.c.l.b16 %v870
        %v940 = vunpack.c.l.b16 %v871
        %v941 = vunpack.c.l.b16 %v872
        %v942 = vunpack.c.l.b16 %v873
        %v943 = vunpack.c.l.b16 %v874
        %v944 = vunpack.c.l.b16 %v875
        %v945 = vunpack.c.l.b16 %v876
        %v946 = vunpack.c.l.b16 %v877
        %v947 = vpack.c.b16 %v916, %v915
        %v948 = vpack.c.b16 %v918, %v917
        %v949 = vpack.c.b16 %v920, %v919
        %v950 = vpack.c.b16 %v922, %v921
        %v951 = vpack.c.b16 %v924, %v923
        %v952 = vpack.c.b16 %v926, %v925
        %v953 = vpack.c.b16 %v928, %v927
        %v954 = vpack.c.b16 %v930, %v929
        %v955 = vpack.c.b16 %v932, %v931
        %v956 = vpack.c.b16 %v934, %v933
        %v957 = vpack.c.b16 %v936, %v935
        %v958 = vpack.c.b16 %v938, %v937
        %v959 = vpack.c.b16 %v940, %v939
        %v960 = vpack.c.b16 %v942, %v941
        %v961 = vpack.c.b16 %v944, %v943
        %v962 = vpack.c.b16 %v946, %v945
        %979 = vmatprep.subr.bf16.mxu0 0
        %980 = vmatpush1.bf16.msra.mxu0 %v947
        %981 = vmatprep.subr.bf16.mxu0 0
        %982 = vmatpush1.bf16.msra.mxu0 %v948
        %983 = vmatprep.subr.bf16.mxu0 0
        %984 = vmatpush1.bf16.msra.mxu0 %v949
        %985 = vmatprep.subr.bf16.mxu0 0
        %986 = vmatpush1.bf16.msra.mxu0 %v950
        %987 = vmatprep.subr.bf16.mxu0 0
        %988 = vmatpush1.bf16.msra.mxu0 %v951
        %989 = vmatprep.subr.bf16.mxu0 0
        %990 = vmatpush1.bf16.msra.mxu0 %v952
        %991 = vmatprep.subr.bf16.mxu0 0
        %992 = vmatpush1.bf16.msra.mxu0 %v953
        %993 = vmatprep.subr.bf16.mxu0 0
        %994 = vmatpush1.bf16.msra.mxu0 %v954
        %995 = vmatprep.subr.bf16.mxu0 0
        %996 = vmatpush1.bf16.msra.mxu0 %v955
        %997 = vmatprep.subr.bf16.mxu0 0
        %998 = vmatpush1.bf16.msra.mxu0 %v956
        %999 = vmatprep.subr.bf16.mxu0 0
        %1000 = vmatpush1.bf16.msra.mxu0 %v957
        %1001 = vmatprep.subr.bf16.mxu0 0
        %1002 = vmatpush1.bf16.msra.mxu0 %v958
        %1003 = vmatprep.subr.bf16.mxu0 0
        %1004 = vmatpush1.bf16.msra.mxu0 %v959
        %1005 = vmatprep.subr.bf16.mxu0 0
        %1006 = vmatpush1.bf16.msra.mxu0 %v960
        %1007 = vmatprep.subr.bf16.mxu0 0
        %1008 = vmatpush1.bf16.msra.mxu0 %v961
        %1009 = vmatprep.subr.bf16.mxu0 0
        %1010 = vmatpush1.bf16.msra.mxu0 %v962
        %1011 = vmatprep.mubr.bf16.mxu0 %v726
        %1012 = vmatmul.mubr.bf16.gmra.mrb[0].mxu0 %v845
        %v1013 = vpop.f32.mrb[0].mxu0
        %v1014 = vadd.f32 %v882, %v1013
        %v1015 = vpop.f32.mrb[0].mxu0
        %v1016 = vpop.f32.mrb[0].mxu0
        %v1017 = vadd.f32 %v882, %v1016
        %v1018 = vpop.f32.mrb[0].mxu0
        %1019 = vdwg.mxu0
        %v1020 = vadd.f32 %v1014, %v1017
        %1021 = vadd.xlane.f32.xlu0 %v1020
        %v1022 = vpop.xlane.xlu0 %1021
        %v1023 = vrot.slane %v1022, 4
        %v1024 = vadd.f32 %v1022, %v1023
        %v1025 = vrot.slane %v1024, 2
        %v1026 = vadd.f32 %v1024, %v1025
        %v1027 = vrot.slane %v1026, 1
        %v1028 = vadd.f32 %v1026, %v1027
        %v1029 = vmul.f32 %v1028, 0.00390625
        %v1030 = vsub.f32 %v1014, %v1029
        %v1031 = vsub.f32 %v1017, %v1029
        %v1032 = vmul.f32 %v1030, %v725
        %v1033 = vmul.f32 %v1031, %v725
        %v1034 = vmul.f32 %v1032, %v1032
        %v1035 = vmul.f32 %v1033, %v1033
        %v1036 = vadd.f32 %v1034, %v1035
        %1037 = vadd.xlane.f32.xlu0 %v1036
        %v1038 = vpop.xlane.xlu0 %1037
        %v1039 = vrot.slane %v1038, 4
        %v1040 = vadd.f32 %v1038, %v1039
        %v1041 = vrot.slane %v1040, 2
        %v1042 = vadd.f32 %v1040, %v1041
        %v1043 = vrot.slane %v1042, 1
        %v1044 = vadd.f32 %v1042, %v1043
        %v1045 = vmul.f32 %v1044, 0.00390625
        %v1046 = vadd.f32 %v1045, 1e-05
        %v1047 = vrsqrt.pop %v1046
        %v1048 = vmul.f32 %v1032, %v1047
        %v1049 = vmul.f32 %v1033, %v1047
        %v1050 = vmax.f32 %v1048, 0.0
        %v1051 = vmax.f32 %v1049, 0.0
        %v1052 = vpack.c.bf16 %v1051, %v1050
        %v1055 = vrot.slane %v1050, 6
        %v1056 = vrot.slane %v1051, 6
        %v1057 = vsel %vm838, %v1055, %v1056
        %v1060 = vsel %vm838, 0.0, %v1055
        %v1061 = vpack.c.bf16 %v1057, %v1060
        %v1062 = vld [vmem:[%s1 + $0x1c0] sm:$0xf]
        %v1063 = vld [vmem:[%s1 + $0x1c4] sm:$0xf]
        %v1064 = vld [vmem:[%s1 + $0x1c8] sm:$0xf]
        %v1065 = vld [vmem:[%s1 + $0x1cc] sm:$0xf]
        %v1066 = vld [vmem:[%s1 + $0x1d0] sm:$0xf]
        %v1067 = vld [vmem:[%s1 + $0x1d4] sm:$0xf]
        %v1068 = vld [vmem:[%s1 + $0x1d8] sm:$0xf]
        %v1069 = vld [vmem:[%s1 + $0x1dc] sm:$0xf]
        %v1070 = vld [vmem:[%s1 + $0x1e0] sm:$0xf]
        %v1071 = vld [vmem:[%s1 + $0x1e4] sm:$0xf]
        %v1072 = vld [vmem:[%s1 + $0x1e8] sm:$0xf]
        %v1073 = vld [vmem:[%s1 + $0x1ec] sm:$0xf]
        %v1074 = vld [vmem:[%s1 + $0x1f0] sm:$0xf]
        %v1075 = vld [vmem:[%s1 + $0x1f4] sm:$0xf]
        %v1076 = vld [vmem:[%s1 + $0x1f8] sm:$0xf]
        %v1077 = vld [vmem:[%s1 + $0x1fc] sm:$0xf]
        %v1078 = vld [vmem:[%s1 + $0x200] sm:$0xf]
        %v1079 = vld [vmem:[%s1 + $0x204] sm:$0xf]
        %v1080 = vld [vmem:[%s1 + $0x208] sm:$0xf]
        %v1081 = vld [vmem:[%s1 + $0x20c] sm:$0xf]
        %v1082 = vld [vmem:[%s1 + $0x210] sm:$0xf]
        %v1083 = vld [vmem:[%s1 + $0x214] sm:$0xf]
        %v1084 = vld [vmem:[%s1 + $0x218] sm:$0xf]
        %v1085 = vld [vmem:[%s1 + $0x21c] sm:$0xf]
        %v1086 = vld [vmem:[%s1 + $0x220] sm:$0xf]
        %v1087 = vld [vmem:[%s1 + $0x224] sm:$0xf]
        %v1088 = vld [vmem:[%s1 + $0x228] sm:$0xf]
        %v1089 = vld [vmem:[%s1 + $0x22c] sm:$0xf]
        %v1090 = vld [vmem:[%s1 + $0x230] sm:$0xf]
        %v1091 = vld [vmem:[%s1 + $0x234] sm:$0xf]
        %v1092 = vld [vmem:[%s1 + $0x238] sm:$0xf]
        %v1093 = vld [vmem:[%s1 + $0x23c] sm:$0xf]
        %v1094 = vld [vmem:[%s2 + $0x4] sm:$0x1]
        %v1095 = vlaneseq
        %v1096 = vshrl.u32 %v1095, 7
        %v1097 = vsub.s32 0, %v1096
        %v1098 = vrot.slane %v1094, %v1097
        %v1131 = vunpack.c.l.b16 %v1062
        %v1132 = vunpack.c.l.b16 %v1063
        %v1133 = vunpack.c.l.b16 %v1064
        %v1134 = vunpack.c.l.b16 %v1065
        %v1135 = vunpack.c.l.b16 %v1066
        %v1136 = vunpack.c.l.b16 %v1067
        %v1137 = vunpack.c.l.b16 %v1068
        %v1138 = vunpack.c.l.b16 %v1069
        %v1139 = vunpack.c.l.b16 %v1070
        %v1140 = vunpack.c.l.b16 %v1071
        %v1141 = vunpack.c.l.b16 %v1072
        %v1142 = vunpack.c.l.b16 %v1073
        %v1143 = vunpack.c.l.b16 %v1074
        %v1144 = vunpack.c.l.b16 %v1075
        %v1145 = vunpack.c.l.b16 %v1076
        %v1146 = vunpack.c.l.b16 %v1077
        %v1147 = vunpack.c.l.b16 %v1078
        %v1148 = vunpack.c.l.b16 %v1079
        %v1149 = vunpack.c.l.b16 %v1080
        %v1150 = vunpack.c.l.b16 %v1081
        %v1151 = vunpack.c.l.b16 %v1082
        %v1152 = vunpack.c.l.b16 %v1083
        %v1153 = vunpack.c.l.b16 %v1084
        %v1154 = vunpack.c.l.b16 %v1085
        %v1155 = vunpack.c.l.b16 %v1086
        %v1156 = vunpack.c.l.b16 %v1087
        %v1157 = vunpack.c.l.b16 %v1088
        %v1158 = vunpack.c.l.b16 %v1089
        %v1159 = vunpack.c.l.b16 %v1090
        %v1160 = vunpack.c.l.b16 %v1091
        %v1161 = vunpack.c.l.b16 %v1092
        %v1162 = vunpack.c.l.b16 %v1093
        %v1163 = vpack.c.b16 %v1132, %v1131
        %v1164 = vpack.c.b16 %v1134, %v1133
        %v1165 = vpack.c.b16 %v1136, %v1135
        %v1166 = vpack.c.b16 %v1138, %v1137
        %v1167 = vpack.c.b16 %v1140, %v1139
        %v1168 = vpack.c.b16 %v1142, %v1141
        %v1169 = vpack.c.b16 %v1144, %v1143
        %v1170 = vpack.c.b16 %v1146, %v1145
        %v1171 = vpack.c.b16 %v1148, %v1147
        %v1172 = vpack.c.b16 %v1150, %v1149
        %v1173 = vpack.c.b16 %v1152, %v1151
        %v1174 = vpack.c.b16 %v1154, %v1153
        %v1175 = vpack.c.b16 %v1156, %v1155
        %v1176 = vpack.c.b16 %v1158, %v1157
        %v1177 = vpack.c.b16 %v1160, %v1159
        %v1178 = vpack.c.b16 %v1162, %v1161
        %1195 = vmatprep.subr.bf16.mxu0 0
        %1196 = vmatpush1.bf16.msra.mxu0 %v1163
        %1197 = vmatprep.subr.bf16.mxu0 0
        %1198 = vmatpush1.bf16.msra.mxu0 %v1164
        %1199 = vmatprep.subr.bf16.mxu0 0
        %1200 = vmatpush1.bf16.msra.mxu0 %v1165
        %1201 = vmatprep.subr.bf16.mxu0 0
        %1202 = vmatpush1.bf16.msra.mxu0 %v1166
        %1203 = vmatprep.subr.bf16.mxu0 0
        %1204 = vmatpush1.bf16.msra.mxu0 %v1167
        %1205 = vmatprep.subr.bf16.mxu0 0
        %1206 = vmatpush1.bf16.msra.mxu0 %v1168
        %1207 = vmatprep.subr.bf16.mxu0 0
        %1208 = vmatpush1.bf16.msra.mxu0 %v1169
        %1209 = vmatprep.subr.bf16.mxu0 0
        %1210 = vmatpush1.bf16.msra.mxu0 %v1170
        %1211 = vmatprep.subr.bf16.mxu0 0
        %1212 = vmatpush1.bf16.msra.mxu0 %v1171
        %1213 = vmatprep.subr.bf16.mxu0 0
        %1214 = vmatpush1.bf16.msra.mxu0 %v1172
        %1215 = vmatprep.subr.bf16.mxu0 0
        %1216 = vmatpush1.bf16.msra.mxu0 %v1173
        %1217 = vmatprep.subr.bf16.mxu0 0
        %1218 = vmatpush1.bf16.msra.mxu0 %v1174
        %1219 = vmatprep.subr.bf16.mxu0 0
        %1220 = vmatpush1.bf16.msra.mxu0 %v1175
        %1221 = vmatprep.subr.bf16.mxu0 0
        %1222 = vmatpush1.bf16.msra.mxu0 %v1176
        %1223 = vmatprep.subr.bf16.mxu0 0
        %1224 = vmatpush1.bf16.msra.mxu0 %v1177
        %1225 = vmatprep.subr.bf16.mxu0 0
        %1226 = vmatpush1.bf16.msra.mxu0 %v1178
        %1227 = vmatprep.mubr.bf16.mxu0 %v1052
        %1228 = vmatmul.mubr.bf16.gmra.mrb[0].mxu0 %v1061
        %v1229 = vpop.f32.mrb[0].mxu0
        %v1230 = vadd.f32 %v1098, %v1229
        %v1231 = vpop.f32.mrb[0].mxu0
        %v1232 = vpop.f32.mrb[0].mxu0
        %v1233 = vadd.f32 %v1098, %v1232
        %v1234 = vpop.f32.mrb[0].mxu0
        %1235 = vdwg.mxu0
        %v1236 = vadd.f32 %v1230, %v1233
        %1237 = vadd.xlane.f32.xlu0 %v1236
        %v1238 = vpop.xlane.xlu0 %1237
        %v1239 = vrot.slane %v1238, 4
        %v1240 = vadd.f32 %v1238, %v1239
        %v1241 = vrot.slane %v1240, 2
        %v1242 = vadd.f32 %v1240, %v1241
        %v1243 = vrot.slane %v1242, 1
        %v1244 = vadd.f32 %v1242, %v1243
        %v1245 = vmul.f32 %v1244, 0.00390625
        %v1246 = vsub.f32 %v1230, %v1245
        %v1247 = vsub.f32 %v1233, %v1245
        %v1248 = vmul.f32 %v1246, %v725
        %v1249 = vmul.f32 %v1247, %v725
        %v1250 = vmul.f32 %v1248, %v1248
        %v1251 = vmul.f32 %v1249, %v1249
        %v1252 = vadd.f32 %v1250, %v1251
        %1253 = vadd.xlane.f32.xlu0 %v1252
        %v1254 = vpop.xlane.xlu0 %1253
        %v1255 = vrot.slane %v1254, 4
        %v1256 = vadd.f32 %v1254, %v1255
        %v1257 = vrot.slane %v1256, 2
        %v1258 = vadd.f32 %v1256, %v1257
        %v1259 = vrot.slane %v1258, 1
        %v1260 = vadd.f32 %v1258, %v1259
        %v1261 = vmul.f32 %v1260, 0.00390625
        %v1262 = vadd.f32 %v1261, 1e-05
        %v1263 = vrsqrt.pop %v1262
        %v1264 = vmul.f32 %v1249, %v1263
        %v1265 = vmax.f32 %v1264, 0.0
        %v1266 = vadd.f32 %v1265, %v833
        %v1267 = vmax.f32 %v1266, 0.0
        %v1268 = vpack.c.bf16 %v1267, %v1267
        %v1269 = vld [vmem:[%s1 + $0x280] sm:$0xf]
        %v1270 = vld [vmem:[%s1 + $0x284] sm:$0xf]
        %v1271 = vld [vmem:[%s1 + $0x288] sm:$0xf]
        %v1272 = vld [vmem:[%s1 + $0x28c] sm:$0xf]
        %v1273 = vld [vmem:[%s1 + $0x290] sm:$0xf]
        %v1274 = vld [vmem:[%s1 + $0x294] sm:$0xf]
        %v1275 = vld [vmem:[%s1 + $0x298] sm:$0xf]
        %v1276 = vld [vmem:[%s1 + $0x29c] sm:$0xf]
        %v1277 = vld [vmem:[%s1 + $0x2a0] sm:$0xf]
        %v1278 = vld [vmem:[%s1 + $0x2a4] sm:$0xf]
        %v1279 = vld [vmem:[%s1 + $0x2a8] sm:$0xf]
        %v1280 = vld [vmem:[%s1 + $0x2ac] sm:$0xf]
        %v1281 = vld [vmem:[%s1 + $0x2b0] sm:$0xf]
        %v1282 = vld [vmem:[%s1 + $0x2b4] sm:$0xf]
        %v1283 = vld [vmem:[%s1 + $0x2b8] sm:$0xf]
        %v1284 = vld [vmem:[%s1 + $0x2bc] sm:$0xf]
        %v1285 = vld [vmem:[%s2 + $0x6] sm:$0x1]
        %v1287 = vshrl.u32 %v1268, 16
        %v1289 = vrot.slane %v1287, 3
        %v1307 = vunpack.c.l.b16 %v1269
        %v1308 = vunpack.c.l.b16 %v1270
        %v1309 = vunpack.c.l.b16 %v1271
        %v1310 = vunpack.c.l.b16 %v1272
        %v1311 = vunpack.c.l.b16 %v1273
        %v1312 = vunpack.c.l.b16 %v1274
        %v1313 = vunpack.c.l.b16 %v1275
        %v1314 = vunpack.c.l.b16 %v1276
        %v1315 = vunpack.c.l.b16 %v1277
        %v1316 = vunpack.c.l.b16 %v1278
        %v1317 = vunpack.c.l.b16 %v1279
        %v1318 = vunpack.c.l.b16 %v1280
        %v1319 = vunpack.c.l.b16 %v1281
        %v1320 = vunpack.c.l.b16 %v1282
        %v1321 = vunpack.c.l.b16 %v1283
        %v1322 = vunpack.c.l.b16 %v1284
        %v1323 = vpack.c.b16 %v1308, %v1307
        %v1324 = vpack.c.b16 %v1310, %v1309
        %v1325 = vpack.c.b16 %v1312, %v1311
        %v1326 = vpack.c.b16 %v1314, %v1313
        %v1327 = vpack.c.b16 %v1316, %v1315
        %v1328 = vpack.c.b16 %v1318, %v1317
        %v1329 = vpack.c.b16 %v1320, %v1319
        %v1330 = vpack.c.b16 %v1322, %v1321
        %1339 = vmatprep.subr.bf16.mxu0 0
        %1340 = vmatpush1.bf16.msra.mxu0 %v1323
        %1341 = vmatprep.subr.bf16.mxu0 0
        %1342 = vmatpush1.bf16.msra.mxu0 %v1324
        %1343 = vmatprep.subr.bf16.mxu0 0
        %1344 = vmatpush1.bf16.msra.mxu0 %v1325
        %1345 = vmatprep.subr.bf16.mxu0 0
        %1346 = vmatpush1.bf16.msra.mxu0 %v1326
        %1347 = vmatprep.subr.bf16.mxu0 0
        %1348 = vmatpush1.bf16.msra.mxu0 %v1327
        %1349 = vmatprep.subr.bf16.mxu0 0
        %1350 = vmatpush1.bf16.msra.mxu0 %v1328
        %1351 = vmatprep.subr.bf16.mxu0 0
        %1352 = vmatpush1.bf16.msra.mxu0 %v1329
        %1353 = vmatprep.subr.bf16.mxu0 0
        %1354 = vmatpush1.bf16.msra.mxu0 %v1330
        %1355 = vmatprep.subr.bf16.mxu0 0
        %1356 = vmatpush1.bf16.msra.mxu0 0
        %1357 = vmatprep.subr.bf16.mxu0 0
        %1358 = vmatpush1.bf16.msra.mxu0 0
        %1359 = vmatprep.subr.bf16.mxu0 0
        %1360 = vmatpush1.bf16.msra.mxu0 0
        %1361 = vmatprep.subr.bf16.mxu0 0
        %1362 = vmatpush1.bf16.msra.mxu0 0
        %1363 = vmatprep.subr.bf16.mxu0 0
        %1364 = vmatpush1.bf16.msra.mxu0 0
        %1365 = vmatprep.subr.bf16.mxu0 0
        %1366 = vmatpush1.bf16.msra.mxu0 0
        %1367 = vmatprep.subr.bf16.mxu0 0
        %1368 = vmatpush1.bf16.msra.mxu0 0
        %1369 = vmatprep.subr.bf16.mxu0 0
        %1370 = vmatpush1.bf16.msra.mxu0 0
        %1371 = vmatprep.mubr.bf16.mxu0 0
        %1372 = vmatmul.mubr.bf16.gmra.mrb[0].mxu0 %v1289
        %v1373 = vpop.f32.mrb[0].mxu0
        %v1374 = vadd.f32 %v1285, %v1373
        %v1375 = vpop.f32.mrb[0].mxu0
        %v1376 = vpop.f32.mrb[0].mxu0
        %v1377 = vpop.f32.mrb[0].mxu0
        %1378 = vdwg.mxu0
        %1379 = vst [vmem:[%s162] sm:$0x1] %v1374
        %s1380 = sand.u32 %s93, 1
        %s1381 = scalar_lea.sflag [#allocation3], %s1380
        %s1382 = sand.u32 %s93, 1
        %s1383 = scalar_lea.vmem [#allocation2], %s1382
        // Predicated region
        $region33: #{tcn_forward.1} parent=31 // pred_check
          %p1384 = pneg %p103
        $region34: #{tcn_forward.1} parent=31 // pred_check_branch
          %1386 = sbr.rel (%p1384) target = $region36
        $region35: #{tcn_forward.1} parent=31 // pred_region
          %s1388 = ssub.s32 16, 16
          %1389 = vsyncadd %s1381, %s1388
          %s1390 = smul.addr %s17, 16
          %s1391 = scalar_lea.hbm %s3, %s1390
          %s1393 = sshll.u32 %s1383, 4
          %s1394 = int_to_ptr.vmem [resolvable:$true] %s1393
          %1396 = dma.vmem_to_hbm [thread:$0]  %s1394, 16, %s1391, %s1381
        $region36: #{tcn_forward.1} parent=31 // pred_fallthru
          _
      $region32: #{tcn_forward.1} parent=5 // pred_fallthru
        _
      %p1397 = scmp.le.s32.totalorder 2, %s12
      // Predicated region
      $region37: #{tcn_forward.1} parent=5 // pred_check
        %p1398 = pneg %p1397
      $region38: #{tcn_forward.1} parent=5 // pred_check_branch
        %1400 = sbr.rel (%p1398) target = $region40
      $region39: #{tcn_forward.1} parent=5 // pred_region
        %s1401 = ssub.s32 %s12, 2
        // Predicated region
        $region41: #{tcn_forward.1} parent=39 // pred_check
          %p1402 = pneg %p109
        $region42: #{tcn_forward.1} parent=39 // pred_check_branch
          %1404 = sbr.rel (%p1402) target = $region44
        $region43: #{tcn_forward.1} parent=39 // pred_region
          %s1405 = sand.u32 %s94, 1
          %s1406 = scalar_lea.sflag [#allocation3], %s1405
          %s1407 = sand.u32 %s94, 1
          %s1408 = scalar_lea.vmem [#allocation2], %s1407
          %1409 = dma.done %s1406, 16
        $region44: #{tcn_forward.1} parent=39 // pred_fallthru
          _
      $region40: #{tcn_forward.1} parent=5 // pred_fallthru
        _
    $region6: #{tcn_forward.1} parent=1 // loop_footer
      %s16 = sadd.s32 1, %s12
    $region7: #{tcn_forward.1} parent=1 // loop_footer_branch
      %11 = sbr.rel target = $region3
    $region8: #{tcn_forward.1} parent=1 // loop_exit
      _
    %1410 = vsyncpa [#allocation3], 1
    %s1411 = scalar_lea.sflag [#allocation3], 1
    %1412 = vsyncpa %s1411, 1

</llo_original>
